<compile_context>
chip_gen: v5e
topology: v5e:2x2
jax: 0.10.0
libtpu: 0.0.40
codegen_flags: <defaults>
</compile_context>

<pallas_src>
import jax
import jax.numpy as jnp
from jax.experimental import pallas as pl
from jax.experimental.pallas import tpu as pltpu

# Stand-ins for `Constants` (small, self-consistent with the module).
P = 2
PTS_PER_POLYGON = 8
EV_PER_POLYGON = 4
DIM = 2
D_COORD = 2            # trailing coordinate dim of the point-cloud inputs
BATCH = 200            # demo batch

LANE = 128             # lane width (batch fast axis)
MAX_SUB_TILE = 16      # sublanes of batch per grid step (16*128 = 2048 elems)

# Row offsets inside the fused (D_COORD, N_ROWS, sub, 128) input buffer.
X_OFF = 0
LX_OFF = X_OFF + PTS_PER_POLYGON        # 8
Y_OFF = LX_OFF + EV_PER_POLYGON         # 12
LY_OFF = Y_OFF + DIM                    # 14
N_ROWS = LY_OFF + EV_PER_POLYGON        # 18


def _n_pairs(n):
    return n * (n + 1) // 2


def _ut_pairs(n):
    return [(i, j) for i in range(n) for j in range(i, n)]


# ------------- static layout of the packed parameter vector ---------------- #
def _build_layout():
    off, layout = 0, {}

    def add(name, size):
        nonlocal off
        layout[name] = off
        off += size

    add("b1_w", P * _n_pairs(PTS_PER_POLYGON)); add("b1_b", P)
    add("b2_w", P * _n_pairs(EV_PER_POLYGON)); add("b2_b", P)
    add("t1_w1", 3 * _n_pairs(DIM)); add("t1_b1", 3)
    add("t1_w2", P * 3); add("t1_b2", P)
    add("t2_w1", 3 * _n_pairs(EV_PER_POLYGON)); add("t2_b1", 3)
    add("t2_w2", P * 3); add("t2_b2", P)
    add("l1_w", (2 * P) * (2 * P))
    return layout, off


_OFF, _N_PACKED = _build_layout()


# ----------------------------- Pallas kernel ------------------------------- #
def _deeponet_kernel(pts_ref, w_ref, out_ref):
    # pts_ref: (D_COORD, N_ROWS, SUB_TILE, LANE) VMEM slab, batch on the last
    # two (sublane, lane) axes.  w_ref: flat f32 SMEM params.  Every value
    # below is a full (SUB_TILE, LANE) slab; feature dims are unrolled.

    def gram_affine(base, n, w_off, b_off, n_out):
        # Fused flatten(a a^T) -> Linear over the symmetric gram: walk the
        # upper triangle once, FMA each gram entry straight into the n_out
        # accumulators (weights pre-symmetrized in the wrapper), never
        # materializing the gram list.
        rows = [[pts_ref[k, base + i, :, :] for i in range(n)]
                for k in range(D_COORD)]
        npair = _n_pairs(n)
        accs = [None] * n_out
        for pidx, (i, j) in enumerate(_ut_pairs(n)):
            g = rows[0][i] * rows[0][j]
            for k in range(1, D_COORD):
                g = g + rows[k][i] * rows[k][j]
            for o in range(n_out):
                term = g * w_ref[w_off + o * npair + pidx]
                accs[o] = term if accs[o] is None else accs[o] + term
        if b_off is not None:
            accs = [a + w_ref[b_off + o] for o, a in enumerate(accs)]
        return accs

    def affine(vecs, w_off, b_off, n_out):
        # out[o] = sum_t w[w_off + o*len(vecs) + t] * vecs[t] (+ bias[o]).
        n_in = len(vecs)
        outs = []
        for o in range(n_out):
            base = w_off + o * n_in
            acc = vecs[0] * w_ref[base]
            for t in range(1, n_in):
                acc = acc + vecs[t] * w_ref[base + t]
            if b_off is not None:
                acc = acc + w_ref[b_off + o]
            outs.append(acc)
        return outs

    def tanh_all(vecs):
        # TODO(synk): verify with pl.lower_as_mlir that tanh lowers to the EUP
        # transcendental slot (not a VPU polynomial expansion).
        return [jnp.tanh(v) for v in vecs]

    # branch1(x), branch2(lx/10): the 1/100 gram scale of the "/10" inputs is
    # folded into the packed branch2 / trunk2 first-layer weights (wrapper).
    b1 = tanh_all(gram_affine(X_OFF, PTS_PER_POLYGON,
                              _OFF["b1_w"], _OFF["b1_b"], P))
    b2 = tanh_all(gram_affine(LX_OFF, EV_PER_POLYGON,
                              _OFF["b2_w"], _OFF["b2_b"], P))

    # trunk1(y), trunk2(ly/10): tanh(L2(tanh(L1(flatten(a a^T))))).
    t1h = tanh_all(gram_affine(Y_OFF, DIM, _OFF["t1_w1"], _OFF["t1_b1"], 3))
    t1 = tanh_all(affine(t1h, _OFF["t1_w2"], _OFF["t1_b2"], P))
    t2h = tanh_all(gram_affine(LY_OFF, EV_PER_POLYGON,
                               _OFF["t2_w1"], _OFF["t2_b1"], 3))
    t2 = tanh_all(affine(t2h, _OFF["t2_w2"], _OFF["t2_b2"], P))

    # s2 = Linear(concat(b1, b2)) (no bias); out = sum(concat(t1, t2) * s2).
    s2 = affine(b1 + b2, _OFF["l1_w"], None, 2 * P)
    s1 = t1 + t2
    res = s1[0] * s2[0]
    for q in range(1, 2 * P):
        res = res + s1[q] * s2[q]
    out_ref[...] = res                       # dense (SUB_TILE, LANE) store


# ------------------------------- wrapper ----------------------------------- #
def _pack_params(params):
    """Pack all weights/biases into one flat f32 vector matching _OFF."""

    def sym_ut(w, n, scale=None):
        # (K, n*n) linear weight on flatten(gram) -> symmetrized upper
        # triangle (K, n(n+1)/2), flattened row-major.
        w = w.reshape(-1, n, n)
        if scale is not None:
            w = w * scale
        cols = []
        for i, j in _ut_pairs(n):
            cols.append(w[:, i, i] if i == j else w[:, i, j] + w[:, j, i])
        return jnp.stack(cols, axis=1).reshape(-1)

    pieces = [
        sym_ut(params["b1_w"], PTS_PER_POLYGON), params["b1_b"],
        sym_ut(params["b2_w"], EV_PER_POLYGON, 0.01), params["b2_b"],   # lx/10
        sym_ut(params["t1_w1"], DIM), params["t1_b1"],
        params["t1_w2"].reshape(-1), params["t1_b2"],
        sym_ut(params["t2_w1"], EV_PER_POLYGON, 0.01), params["t2_b1"],  # ly/10
        params["t2_w2"].reshape(-1), params["t2_b2"],
        params["l1_w"].reshape(-1),
    ]
    packed = jnp.concatenate([p.astype(jnp.float32) for p in pieces])
    assert packed.shape[0] == _N_PACKED
    return packed


def deeponet_forward(x, lx, y, ly, params):
    batch = x.shape[0]

    # Batch -> (sublane, lane) = (n_sub, 128).  Small batches: one grid step
    # covering the whole padded batch (best on single-TC v5e/v6e).  Large
    # batches: SUB_TILE=16 sublanes per step (multiple of 8 -> aligned blocks)
    # so the "parallel" grid axis can feed both v7x TensorCores.
    n_sub = -(-batch // LANE)
    if n_sub <= MAX_SUB_TILE:
        sub_tile = n_sub
    else:
        sub_tile = MAX_SUB_TILE
        n_sub = -(-n_sub // sub_tile) * sub_tile
    bp = n_sub * LANE
    pad = bp - batch
    n_steps = n_sub // sub_tile

    def to_lanes(a):
        # (B, n, d) -> (d, n, n_sub, 128): batch on sublane + lane axes.
        a = jnp.transpose(a, (2, 1, 0)).astype(jnp.float32)
        a = jnp.pad(a, ((0, 0), (0, 0), (0, pad)))
        return a.reshape(a.shape[0], a.shape[1], n_sub, LANE)

    # One fused input buffer -> a single DMA per grid step.
    pts = jnp.concatenate([to_lanes(a) for a in (x, lx, y, ly)], axis=1)
    w = _pack_params(params)

    out = pl.pallas_call(
        _deeponet_kernel,
        out_shape=jax.ShapeDtypeStruct((n_sub, LANE), jnp.float32),
        grid=(n_steps,),
        in_specs=[
            pl.BlockSpec((D_COORD, N_ROWS, sub_tile, LANE),
                         lambda i: (0, 0, i, 0)),
            pl.BlockSpec(memory_space=pltpu.MemorySpace.SMEM),  # packed params
        ],
        out_specs=pl.BlockSpec((sub_tile, LANE), lambda i: (i, 0)),
        compiler_params=pltpu.CompilerParams(
            dimension_semantics=("parallel",)),
    )(pts, w)
    return out.reshape(-1)[:batch]


# --------------------- deterministic parameter init ------------------------ #
def init_params(key):
    def linear_init(k, out_f, in_f, bias=True):
        k1, k2 = jax.random.split(k)
        bound = 1.0 / float(in_f) ** 0.5
        w = jax.random.uniform(k1, (out_f, in_f), jnp.float32, -bound, bound)
        b = (jax.random.uniform(k2, (out_f,), jnp.float32, -bound, bound)
             if bias else None)
        return w, b

    keys = jax.random.split(key, 7)
    params = {}
    params["b1_w"], params["b1_b"] = linear_init(keys[0], P, PTS_PER_POLYGON ** 2)
    params["b2_w"], params["b2_b"] = linear_init(keys[1], P, EV_PER_POLYGON ** 2)
    params["t1_w1"], params["t1_b1"] = linear_init(keys[2], 3, DIM ** 2)
    params["t1_w2"], params["t1_b2"] = linear_init(keys[3], P, 3)
    params["t2_w1"], params["t2_b1"] = linear_init(keys[4], 3, EV_PER_POLYGON ** 2)
    params["t2_w2"], params["t2_b2"] = linear_init(keys[5], P, 3)
    params["l1_w"], _ = linear_init(keys[6], 2 * P, 2 * P, bias=False)
    return params


# ------------------------- pure-JAX reference ------------------------------ #
def ref_forward(x, lx, y, ly, params):
    hi = jax.lax.Precision.HIGHEST

    def branch_ref(a, w, b):
        g = jnp.matmul(a, jnp.swapaxes(a, 1, 2), precision=hi)
        s = g.reshape(g.shape[0], -1)
        return jnp.tanh(jnp.dot(s, w.T, precision=hi) + b)

    def trunk_ref(a, w1, b1, w2, b2):
        g = jnp.matmul(a, jnp.swapaxes(a, 1, 2), precision=hi)
        s = g.reshape(g.shape[0], -1)
        s = jnp.tanh(jnp.dot(s, w1.T, precision=hi) + b1)
        return jnp.tanh(jnp.dot(s, w2.T, precision=hi) + b2)

    s1 = jnp.concatenate(
        [trunk_ref(y, params["t1_w1"], params["t1_b1"],
                   params["t1_w2"], params["t1_b2"]),
         trunk_ref(ly / 10.0, params["t2_w1"], params["t2_b1"],
                   params["t2_w2"], params["t2_b2"])], axis=-1)
    s2 = jnp.dot(
        jnp.concatenate(
            [branch_ref(x, params["b1_w"], params["b1_b"]),
             branch_ref(lx / 10.0, params["b2_w"], params["b2_b"])], axis=-1),
        params["l1_w"].T, precision=hi)
    return jnp.sum(s1 * s2, axis=-1)


# ---------------------------------- main ------------------------------------ #
if __name__ == "__main__":
    root = jax.random.PRNGKey(0)
    k_params, kx, klx, ky, kly = jax.random.split(root, 5)

    params = init_params(k_params)

    x = jax.random.normal(kx, (BATCH, PTS_PER_POLYGON, D_COORD), jnp.float32)
    lx = jax.random.normal(klx, (BATCH, EV_PER_POLYGON, D_COORD), jnp.float32)
    y = jax.random.normal(ky, (BATCH, DIM, D_COORD), jnp.float32)
    ly = jax.random.normal(kly, (BATCH, EV_PER_POLYGON, D_COORD), jnp.float32)

    out = deeponet_forward(x, lx, y, ly, params)
    out = jax.block_until_ready(out)

    ref = ref_forward(x, lx, y, ly, params)
    assert out.shape == (BATCH,)
    assert jnp.allclose(out, ref, atol=1e-4, rtol=1e-4), (out, ref)

    print("KERNEL_OK")
</pallas_src>

<mosaic_0001>
module attributes {stable_mosaic.version = 11 : i64} {
  func.func @_deeponet_kernel(%arg0: i32, %arg1: memref<2x18x2x128xf32, #tpu.memory_space<vmem>>, %arg2: memref<173xf32, #tpu.memory_space<smem>>, %arg3: memref<2x128xf32, #tpu.memory_space<vmem>>) attributes {dimension_semantics = [#tpu.dimension_semantics<parallel>], iteration_bounds = array<i64: 1>, scalar_prefetch = 0 : i64, scratch_operands = 0 : i64, tpu.core_type = #tpu.core_type<tc>, window_params = [{transform_indices = @transform_0, window_bounds = array<i64: 2, 18, 2, 128>}, {transform_indices = @transform_1, window_bounds = array<i64: 173>}, {transform_indices = @transform_2, window_bounds = array<i64: 2, 128>}]} {
    %c0 = arith.constant 0 : index
    %c0_0 = arith.constant 0 : index
    %c0_1 = arith.constant 0 : index
    %c0_2 = arith.constant 0 : index
    %0 = vector.load %arg1[%c0, %c0_0, %c0_1, %c0_2] : memref<2x18x2x128xf32, #tpu.memory_space<vmem>>, vector<1x1x2x128xf32>
    %1 = vector.shape_cast %0 : vector<1x1x2x128xf32> to vector<2x128xf32>
    %c0_3 = arith.constant 0 : index
    %c1 = arith.constant 1 : index
    %c0_4 = arith.constant 0 : index
    %c0_5 = arith.constant 0 : index
    %2 = vector.load %arg1[%c0_3, %c1, %c0_4, %c0_5] : memref<2x18x2x128xf32, #tpu.memory_space<vmem>>, vector<1x1x2x128xf32>
    %3 = vector.shape_cast %2 : vector<1x1x2x128xf32> to vector<2x128xf32>
    %c0_6 = arith.constant 0 : index
    %c2 = arith.constant 2 : index
    %c0_7 = arith.constant 0 : index
    %c0_8 = arith.constant 0 : index
    %4 = vector.load %arg1[%c0_6, %c2, %c0_7, %c0_8] : memref<2x18x2x128xf32, #tpu.memory_space<vmem>>, vector<1x1x2x128xf32>
    %5 = vector.shape_cast %4 : vector<1x1x2x128xf32> to vector<2x128xf32>
    %c0_9 = arith.constant 0 : index
    %c3 = arith.constant 3 : index
    %c0_10 = arith.constant 0 : index
    %c0_11 = arith.constant 0 : index
    %6 = vector.load %arg1[%c0_9, %c3, %c0_10, %c0_11] : memref<2x18x2x128xf32, #tpu.memory_space<vmem>>, vector<1x1x2x128xf32>
    %7 = vector.shape_cast %6 : vector<1x1x2x128xf32> to vector<2x128xf32>
    %c0_12 = arith.constant 0 : index
    %c4 = arith.constant 4 : index
    %c0_13 = arith.constant 0 : index
    %c0_14 = arith.constant 0 : index
    %8 = vector.load %arg1[%c0_12, %c4, %c0_13, %c0_14] : memref<2x18x2x128xf32, #tpu.memory_space<vmem>>, vector<1x1x2x128xf32>
    %9 = vector.shape_cast %8 : vector<1x1x2x128xf32> to vector<2x128xf32>
    %c0_15 = arith.constant 0 : index
    %c5 = arith.constant 5 : index
    %c0_16 = arith.constant 0 : index
    %c0_17 = arith.constant 0 : index
    %10 = vector.load %arg1[%c0_15, %c5, %c0_16, %c0_17] : memref<2x18x2x128xf32, #tpu.memory_space<vmem>>, vector<1x1x2x128xf32>
    %11 = vector.shape_cast %10 : vector<1x1x2x128xf32> to vector<2x128xf32>
    %c0_18 = arith.constant 0 : index
    %c6 = arith.constant 6 : index
    %c0_19 = arith.constant 0 : index
    %c0_20 = arith.constant 0 : index
    %12 = vector.load %arg1[%c0_18, %c6, %c0_19, %c0_20] : memref<2x18x2x128xf32, #tpu.memory_space<vmem>>, vector<1x1x2x128xf32>
    %13 = vector.shape_cast %12 : vector<1x1x2x128xf32> to vector<2x128xf32>
    %c0_21 = arith.constant 0 : index
    %c7 = arith.constant 7 : index
    %c0_22 = arith.constant 0 : index
    %c0_23 = arith.constant 0 : index
    %14 = vector.load %arg1[%c0_21, %c7, %c0_22, %c0_23] : memref<2x18x2x128xf32, #tpu.memory_space<vmem>>, vector<1x1x2x128xf32>
    %15 = vector.shape_cast %14 : vector<1x1x2x128xf32> to vector<2x128xf32>
    %c1_24 = arith.constant 1 : index
    %c0_25 = arith.constant 0 : index
    %c0_26 = arith.constant 0 : index
    %c0_27 = arith.constant 0 : index
    %16 = vector.load %arg1[%c1_24, %c0_25, %c0_26, %c0_27] : memref<2x18x2x128xf32, #tpu.memory_space<vmem>>, vector<1x1x2x128xf32>
    %17 = vector.shape_cast %16 : vector<1x1x2x128xf32> to vector<2x128xf32>
    %c1_28 = arith.constant 1 : index
    %c1_29 = arith.constant 1 : index
    %c0_30 = arith.constant 0 : index
    %c0_31 = arith.constant 0 : index
    %18 = vector.load %arg1[%c1_28, %c1_29, %c0_30, %c0_31] : memref<2x18x2x128xf32, #tpu.memory_space<vmem>>, vector<1x1x2x128xf32>
    %19 = vector.shape_cast %18 : vector<1x1x2x128xf32> to vector<2x128xf32>
    %c1_32 = arith.constant 1 : index
    %c2_33 = arith.constant 2 : index
    %c0_34 = arith.constant 0 : index
    %c0_35 = arith.constant 0 : index
    %20 = vector.load %arg1[%c1_32, %c2_33, %c0_34, %c0_35] : memref<2x18x2x128xf32, #tpu.memory_space<vmem>>, vector<1x1x2x128xf32>
    %21 = vector.shape_cast %20 : vector<1x1x2x128xf32> to vector<2x128xf32>
    %c1_36 = arith.constant 1 : index
    %c3_37 = arith.constant 3 : index
    %c0_38 = arith.constant 0 : index
    %c0_39 = arith.constant 0 : index
    %22 = vector.load %arg1[%c1_36, %c3_37, %c0_38, %c0_39] : memref<2x18x2x128xf32, #tpu.memory_space<vmem>>, vector<1x1x2x128xf32>
    %23 = vector.shape_cast %22 : vector<1x1x2x128xf32> to vector<2x128xf32>
    %c1_40 = arith.constant 1 : index
    %c4_41 = arith.constant 4 : index
    %c0_42 = arith.constant 0 : index
    %c0_43 = arith.constant 0 : index
    %24 = vector.load %arg1[%c1_40, %c4_41, %c0_42, %c0_43] : memref<2x18x2x128xf32, #tpu.memory_space<vmem>>, vector<1x1x2x128xf32>
    %25 = vector.shape_cast %24 : vector<1x1x2x128xf32> to vector<2x128xf32>
    %c1_44 = arith.constant 1 : index
    %c5_45 = arith.constant 5 : index
    %c0_46 = arith.constant 0 : index
    %c0_47 = arith.constant 0 : index
    %26 = vector.load %arg1[%c1_44, %c5_45, %c0_46, %c0_47] : memref<2x18x2x128xf32, #tpu.memory_space<vmem>>, vector<1x1x2x128xf32>
    %27 = vector.shape_cast %26 : vector<1x1x2x128xf32> to vector<2x128xf32>
    %c1_48 = arith.constant 1 : index
    %c6_49 = arith.constant 6 : index
    %c0_50 = arith.constant 0 : index
    %c0_51 = arith.constant 0 : index
    %28 = vector.load %arg1[%c1_48, %c6_49, %c0_50, %c0_51] : memref<2x18x2x128xf32, #tpu.memory_space<vmem>>, vector<1x1x2x128xf32>
    %29 = vector.shape_cast %28 : vector<1x1x2x128xf32> to vector<2x128xf32>
    %c1_52 = arith.constant 1 : index
    %c7_53 = arith.constant 7 : index
    %c0_54 = arith.constant 0 : index
    %c0_55 = arith.constant 0 : index
    %30 = vector.load %arg1[%c1_52, %c7_53, %c0_54, %c0_55] : memref<2x18x2x128xf32, #tpu.memory_space<vmem>>, vector<1x1x2x128xf32>
    %31 = vector.shape_cast %30 : vector<1x1x2x128xf32> to vector<2x128xf32>
    %32 = arith.mulf %1, %1 : vector<2x128xf32>
    %33 = arith.mulf %17, %17 : vector<2x128xf32>
    %34 = arith.addf %32, %33 : vector<2x128xf32>
    %c0_56 = arith.constant 0 : index
    %35 = memref.load %arg2[%c0_56] : memref<173xf32, #tpu.memory_space<smem>>
    %36 = vector.broadcast %35 : f32 to vector<2x128xf32>
    %37 = arith.mulf %34, %36 : vector<2x128xf32>
    %c36 = arith.constant 36 : index
    %38 = memref.load %arg2[%c36] : memref<173xf32, #tpu.memory_space<smem>>
    %39 = vector.broadcast %38 : f32 to vector<2x128xf32>
    %40 = arith.mulf %34, %39 : vector<2x128xf32>
    %41 = arith.mulf %1, %3 : vector<2x128xf32>
    %42 = arith.mulf %17, %19 : vector<2x128xf32>
    %43 = arith.addf %41, %42 : vector<2x128xf32>
    %c1_57 = arith.constant 1 : index
    %44 = memref.load %arg2[%c1_57] : memref<173xf32, #tpu.memory_space<smem>>
    %45 = vector.broadcast %44 : f32 to vector<2x128xf32>
    %46 = arith.mulf %43, %45 : vector<2x128xf32>
    %47 = arith.addf %37, %46 : vector<2x128xf32>
    %c37 = arith.constant 37 : index
    %48 = memref.load %arg2[%c37] : memref<173xf32, #tpu.memory_space<smem>>
    %49 = vector.broadcast %48 : f32 to vector<2x128xf32>
    %50 = arith.mulf %43, %49 : vector<2x128xf32>
    %51 = arith.addf %40, %50 : vector<2x128xf32>
    %52 = arith.mulf %1, %5 : vector<2x128xf32>
    %53 = arith.mulf %17, %21 : vector<2x128xf32>
    %54 = arith.addf %52, %53 : vector<2x128xf32>
    %c2_58 = arith.constant 2 : index
    %55 = memref.load %arg2[%c2_58] : memref<173xf32, #tpu.memory_space<smem>>
    %56 = vector.broadcast %55 : f32 to vector<2x128xf32>
    %57 = arith.mulf %54, %56 : vector<2x128xf32>
    %58 = arith.addf %47, %57 : vector<2x128xf32>
    %c38 = arith.constant 38 : index
    %59 = memref.load %arg2[%c38] : memref<173xf32, #tpu.memory_space<smem>>
    %60 = vector.broadcast %59 : f32 to vector<2x128xf32>
    %61 = arith.mulf %54, %60 : vector<2x128xf32>
    %62 = arith.addf %51, %61 : vector<2x128xf32>
    %63 = arith.mulf %1, %7 : vector<2x128xf32>
    %64 = arith.mulf %17, %23 : vector<2x128xf32>
    %65 = arith.addf %63, %64 : vector<2x128xf32>
    %c3_59 = arith.constant 3 : index
    %66 = memref.load %arg2[%c3_59] : memref<173xf32, #tpu.memory_space<smem>>
    %67 = vector.broadcast %66 : f32 to vector<2x128xf32>
    %68 = arith.mulf %65, %67 : vector<2x128xf32>
    %69 = arith.addf %58, %68 : vector<2x128xf32>
    %c39 = arith.constant 39 : index
    %70 = memref.load %arg2[%c39] : memref<173xf32, #tpu.memory_space<smem>>
    %71 = vector.broadcast %70 : f32 to vector<2x128xf32>
    %72 = arith.mulf %65, %71 : vector<2x128xf32>
    %73 = arith.addf %62, %72 : vector<2x128xf32>
    %74 = arith.mulf %1, %9 : vector<2x128xf32>
    %75 = arith.mulf %17, %25 : vector<2x128xf32>
    %76 = arith.addf %74, %75 : vector<2x128xf32>
    %c4_60 = arith.constant 4 : index
    %77 = memref.load %arg2[%c4_60] : memref<173xf32, #tpu.memory_space<smem>>
    %78 = vector.broadcast %77 : f32 to vector<2x128xf32>
    %79 = arith.mulf %76, %78 : vector<2x128xf32>
    %80 = arith.addf %69, %79 : vector<2x128xf32>
    %c40 = arith.constant 40 : index
    %81 = memref.load %arg2[%c40] : memref<173xf32, #tpu.memory_space<smem>>
    %82 = vector.broadcast %81 : f32 to vector<2x128xf32>
    %83 = arith.mulf %76, %82 : vector<2x128xf32>
    %84 = arith.addf %73, %83 : vector<2x128xf32>
    %85 = arith.mulf %1, %11 : vector<2x128xf32>
    %86 = arith.mulf %17, %27 : vector<2x128xf32>
    %87 = arith.addf %85, %86 : vector<2x128xf32>
    %c5_61 = arith.constant 5 : index
    %88 = memref.load %arg2[%c5_61] : memref<173xf32, #tpu.memory_space<smem>>
    %89 = vector.broadcast %88 : f32 to vector<2x128xf32>
    %90 = arith.mulf %87, %89 : vector<2x128xf32>
    %91 = arith.addf %80, %90 : vector<2x128xf32>
    %c41 = arith.constant 41 : index
    %92 = memref.load %arg2[%c41] : memref<173xf32, #tpu.memory_space<smem>>
    %93 = vector.broadcast %92 : f32 to vector<2x128xf32>
    %94 = arith.mulf %87, %93 : vector<2x128xf32>
    %95 = arith.addf %84, %94 : vector<2x128xf32>
    %96 = arith.mulf %1, %13 : vector<2x128xf32>
    %97 = arith.mulf %17, %29 : vector<2x128xf32>
    %98 = arith.addf %96, %97 : vector<2x128xf32>
    %c6_62 = arith.constant 6 : index
    %99 = memref.load %arg2[%c6_62] : memref<173xf32, #tpu.memory_space<smem>>
    %100 = vector.broadcast %99 : f32 to vector<2x128xf32>
    %101 = arith.mulf %98, %100 : vector<2x128xf32>
    %102 = arith.addf %91, %101 : vector<2x128xf32>
    %c42 = arith.constant 42 : index
    %103 = memref.load %arg2[%c42] : memref<173xf32, #tpu.memory_space<smem>>
    %104 = vector.broadcast %103 : f32 to vector<2x128xf32>
    %105 = arith.mulf %98, %104 : vector<2x128xf32>
    %106 = arith.addf %95, %105 : vector<2x128xf32>
    %107 = arith.mulf %1, %15 : vector<2x128xf32>
    %108 = arith.mulf %17, %31 : vector<2x128xf32>
    %109 = arith.addf %107, %108 : vector<2x128xf32>
    %c7_63 = arith.constant 7 : index
    %110 = memref.load %arg2[%c7_63] : memref<173xf32, #tpu.memory_space<smem>>
    %111 = vector.broadcast %110 : f32 to vector<2x128xf32>
    %112 = arith.mulf %109, %111 : vector<2x128xf32>
    %113 = arith.addf %102, %112 : vector<2x128xf32>
    %c43 = arith.constant 43 : index
    %114 = memref.load %arg2[%c43] : memref<173xf32, #tpu.memory_space<smem>>
    %115 = vector.broadcast %114 : f32 to vector<2x128xf32>
    %116 = arith.mulf %109, %115 : vector<2x128xf32>
    %117 = arith.addf %106, %116 : vector<2x128xf32>
    %118 = arith.mulf %3, %3 : vector<2x128xf32>
    %119 = arith.mulf %19, %19 : vector<2x128xf32>
    %120 = arith.addf %118, %119 : vector<2x128xf32>
    %c8 = arith.constant 8 : index
    %121 = memref.load %arg2[%c8] : memref<173xf32, #tpu.memory_space<smem>>
    %122 = vector.broadcast %121 : f32 to vector<2x128xf32>
    %123 = arith.mulf %120, %122 : vector<2x128xf32>
    %124 = arith.addf %113, %123 : vector<2x128xf32>
    %c44 = arith.constant 44 : index
    %125 = memref.load %arg2[%c44] : memref<173xf32, #tpu.memory_space<smem>>
    %126 = vector.broadcast %125 : f32 to vector<2x128xf32>
    %127 = arith.mulf %120, %126 : vector<2x128xf32>
    %128 = arith.addf %117, %127 : vector<2x128xf32>
    %129 = arith.mulf %3, %5 : vector<2x128xf32>
    %130 = arith.mulf %19, %21 : vector<2x128xf32>
    %131 = arith.addf %129, %130 : vector<2x128xf32>
    %c9 = arith.constant 9 : index
    %132 = memref.load %arg2[%c9] : memref<173xf32, #tpu.memory_space<smem>>
    %133 = vector.broadcast %132 : f32 to vector<2x128xf32>
    %134 = arith.mulf %131, %133 : vector<2x128xf32>
    %135 = arith.addf %124, %134 : vector<2x128xf32>
    %c45 = arith.constant 45 : index
    %136 = memref.load %arg2[%c45] : memref<173xf32, #tpu.memory_space<smem>>
    %137 = vector.broadcast %136 : f32 to vector<2x128xf32>
    %138 = arith.mulf %131, %137 : vector<2x128xf32>
    %139 = arith.addf %128, %138 : vector<2x128xf32>
    %140 = arith.mulf %3, %7 : vector<2x128xf32>
    %141 = arith.mulf %19, %23 : vector<2x128xf32>
    %142 = arith.addf %140, %141 : vector<2x128xf32>
    %c10 = arith.constant 10 : index
    %143 = memref.load %arg2[%c10] : memref<173xf32, #tpu.memory_space<smem>>
    %144 = vector.broadcast %143 : f32 to vector<2x128xf32>
    %145 = arith.mulf %142, %144 : vector<2x128xf32>
    %146 = arith.addf %135, %145 : vector<2x128xf32>
    %c46 = arith.constant 46 : index
    %147 = memref.load %arg2[%c46] : memref<173xf32, #tpu.memory_space<smem>>
    %148 = vector.broadcast %147 : f32 to vector<2x128xf32>
    %149 = arith.mulf %142, %148 : vector<2x128xf32>
    %150 = arith.addf %139, %149 : vector<2x128xf32>
    %151 = arith.mulf %3, %9 : vector<2x128xf32>
    %152 = arith.mulf %19, %25 : vector<2x128xf32>
    %153 = arith.addf %151, %152 : vector<2x128xf32>
    %c11 = arith.constant 11 : index
    %154 = memref.load %arg2[%c11] : memref<173xf32, #tpu.memory_space<smem>>
    %155 = vector.broadcast %154 : f32 to vector<2x128xf32>
    %156 = arith.mulf %153, %155 : vector<2x128xf32>
    %157 = arith.addf %146, %156 : vector<2x128xf32>
    %c47 = arith.constant 47 : index
    %158 = memref.load %arg2[%c47] : memref<173xf32, #tpu.memory_space<smem>>
    %159 = vector.broadcast %158 : f32 to vector<2x128xf32>
    %160 = arith.mulf %153, %159 : vector<2x128xf32>
    %161 = arith.addf %150, %160 : vector<2x128xf32>
    %162 = arith.mulf %3, %11 : vector<2x128xf32>
    %163 = arith.mulf %19, %27 : vector<2x128xf32>
    %164 = arith.addf %162, %163 : vector<2x128xf32>
    %c12 = arith.constant 12 : index
    %165 = memref.load %arg2[%c12] : memref<173xf32, #tpu.memory_space<smem>>
    %166 = vector.broadcast %165 : f32 to vector<2x128xf32>
    %167 = arith.mulf %164, %166 : vector<2x128xf32>
    %168 = arith.addf %157, %167 : vector<2x128xf32>
    %c48 = arith.constant 48 : index
    %169 = memref.load %arg2[%c48] : memref<173xf32, #tpu.memory_space<smem>>
    %170 = vector.broadcast %169 : f32 to vector<2x128xf32>
    %171 = arith.mulf %164, %170 : vector<2x128xf32>
    %172 = arith.addf %161, %171 : vector<2x128xf32>
    %173 = arith.mulf %3, %13 : vector<2x128xf32>
    %174 = arith.mulf %19, %29 : vector<2x128xf32>
    %175 = arith.addf %173, %174 : vector<2x128xf32>
    %c13 = arith.constant 13 : index
    %176 = memref.load %arg2[%c13] : memref<173xf32, #tpu.memory_space<smem>>
    %177 = vector.broadcast %176 : f32 to vector<2x128xf32>
    %178 = arith.mulf %175, %177 : vector<2x128xf32>
    %179 = arith.addf %168, %178 : vector<2x128xf32>
    %c49 = arith.constant 49 : index
    %180 = memref.load %arg2[%c49] : memref<173xf32, #tpu.memory_space<smem>>
    %181 = vector.broadcast %180 : f32 to vector<2x128xf32>
    %182 = arith.mulf %175, %181 : vector<2x128xf32>
    %183 = arith.addf %172, %182 : vector<2x128xf32>
    %184 = arith.mulf %3, %15 : vector<2x128xf32>
    %185 = arith.mulf %19, %31 : vector<2x128xf32>
    %186 = arith.addf %184, %185 : vector<2x128xf32>
    %c14 = arith.constant 14 : index
    %187 = memref.load %arg2[%c14] : memref<173xf32, #tpu.memory_space<smem>>
    %188 = vector.broadcast %187 : f32 to vector<2x128xf32>
    %189 = arith.mulf %186, %188 : vector<2x128xf32>
    %190 = arith.addf %179, %189 : vector<2x128xf32>
    %c50 = arith.constant 50 : index
    %191 = memref.load %arg2[%c50] : memref<173xf32, #tpu.memory_space<smem>>
    %192 = vector.broadcast %191 : f32 to vector<2x128xf32>
    %193 = arith.mulf %186, %192 : vector<2x128xf32>
    %194 = arith.addf %183, %193 : vector<2x128xf32>
    %195 = arith.mulf %5, %5 : vector<2x128xf32>
    %196 = arith.mulf %21, %21 : vector<2x128xf32>
    %197 = arith.addf %195, %196 : vector<2x128xf32>
    %c15 = arith.constant 15 : index
    %198 = memref.load %arg2[%c15] : memref<173xf32, #tpu.memory_space<smem>>
    %199 = vector.broadcast %198 : f32 to vector<2x128xf32>
    %200 = arith.mulf %197, %199 : vector<2x128xf32>
    %201 = arith.addf %190, %200 : vector<2x128xf32>
    %c51 = arith.constant 51 : index
    %202 = memref.load %arg2[%c51] : memref<173xf32, #tpu.memory_space<smem>>
    %203 = vector.broadcast %202 : f32 to vector<2x128xf32>
    %204 = arith.mulf %197, %203 : vector<2x128xf32>
    %205 = arith.addf %194, %204 : vector<2x128xf32>
    %206 = arith.mulf %5, %7 : vector<2x128xf32>
    %207 = arith.mulf %21, %23 : vector<2x128xf32>
    %208 = arith.addf %206, %207 : vector<2x128xf32>
    %c16 = arith.constant 16 : index
    %209 = memref.load %arg2[%c16] : memref<173xf32, #tpu.memory_space<smem>>
    %210 = vector.broadcast %209 : f32 to vector<2x128xf32>
    %211 = arith.mulf %208, %210 : vector<2x128xf32>
    %212 = arith.addf %201, %211 : vector<2x128xf32>
    %c52 = arith.constant 52 : index
    %213 = memref.load %arg2[%c52] : memref<173xf32, #tpu.memory_space<smem>>
    %214 = vector.broadcast %213 : f32 to vector<2x128xf32>
    %215 = arith.mulf %208, %214 : vector<2x128xf32>
    %216 = arith.addf %205, %215 : vector<2x128xf32>
    %217 = arith.mulf %5, %9 : vector<2x128xf32>
    %218 = arith.mulf %21, %25 : vector<2x128xf32>
    %219 = arith.addf %217, %218 : vector<2x128xf32>
    %c17 = arith.constant 17 : index
    %220 = memref.load %arg2[%c17] : memref<173xf32, #tpu.memory_space<smem>>
    %221 = vector.broadcast %220 : f32 to vector<2x128xf32>
    %222 = arith.mulf %219, %221 : vector<2x128xf32>
    %223 = arith.addf %212, %222 : vector<2x128xf32>
    %c53 = arith.constant 53 : index
    %224 = memref.load %arg2[%c53] : memref<173xf32, #tpu.memory_space<smem>>
    %225 = vector.broadcast %224 : f32 to vector<2x128xf32>
    %226 = arith.mulf %219, %225 : vector<2x128xf32>
    %227 = arith.addf %216, %226 : vector<2x128xf32>
    %228 = arith.mulf %5, %11 : vector<2x128xf32>
    %229 = arith.mulf %21, %27 : vector<2x128xf32>
    %230 = arith.addf %228, %229 : vector<2x128xf32>
    %c18 = arith.constant 18 : index
    %231 = memref.load %arg2[%c18] : memref<173xf32, #tpu.memory_space<smem>>
    %232 = vector.broadcast %231 : f32 to vector<2x128xf32>
    %233 = arith.mulf %230, %232 : vector<2x128xf32>
    %234 = arith.addf %223, %233 : vector<2x128xf32>
    %c54 = arith.constant 54 : index
    %235 = memref.load %arg2[%c54] : memref<173xf32, #tpu.memory_space<smem>>
    %236 = vector.broadcast %235 : f32 to vector<2x128xf32>
    %237 = arith.mulf %230, %236 : vector<2x128xf32>
    %238 = arith.addf %227, %237 : vector<2x128xf32>
    %239 = arith.mulf %5, %13 : vector<2x128xf32>
    %240 = arith.mulf %21, %29 : vector<2x128xf32>
    %241 = arith.addf %239, %240 : vector<2x128xf32>
    %c19 = arith.constant 19 : index
    %242 = memref.load %arg2[%c19] : memref<173xf32, #tpu.memory_space<smem>>
    %243 = vector.broadcast %242 : f32 to vector<2x128xf32>
    %244 = arith.mulf %241, %243 : vector<2x128xf32>
    %245 = arith.addf %234, %244 : vector<2x128xf32>
    %c55 = arith.constant 55 : index
    %246 = memref.load %arg2[%c55] : memref<173xf32, #tpu.memory_space<smem>>
    %247 = vector.broadcast %246 : f32 to vector<2x128xf32>
    %248 = arith.mulf %241, %247 : vector<2x128xf32>
    %249 = arith.addf %238, %248 : vector<2x128xf32>
    %250 = arith.mulf %5, %15 : vector<2x128xf32>
    %251 = arith.mulf %21, %31 : vector<2x128xf32>
    %252 = arith.addf %250, %251 : vector<2x128xf32>
    %c20 = arith.constant 20 : index
    %253 = memref.load %arg2[%c20] : memref<173xf32, #tpu.memory_space<smem>>
    %254 = vector.broadcast %253 : f32 to vector<2x128xf32>
    %255 = arith.mulf %252, %254 : vector<2x128xf32>
    %256 = arith.addf %245, %255 : vector<2x128xf32>
    %c56 = arith.constant 56 : index
    %257 = memref.load %arg2[%c56] : memref<173xf32, #tpu.memory_space<smem>>
    %258 = vector.broadcast %257 : f32 to vector<2x128xf32>
    %259 = arith.mulf %252, %258 : vector<2x128xf32>
    %260 = arith.addf %249, %259 : vector<2x128xf32>
    %261 = arith.mulf %7, %7 : vector<2x128xf32>
    %262 = arith.mulf %23, %23 : vector<2x128xf32>
    %263 = arith.addf %261, %262 : vector<2x128xf32>
    %c21 = arith.constant 21 : index
    %264 = memref.load %arg2[%c21] : memref<173xf32, #tpu.memory_space<smem>>
    %265 = vector.broadcast %264 : f32 to vector<2x128xf32>
    %266 = arith.mulf %263, %265 : vector<2x128xf32>
    %267 = arith.addf %256, %266 : vector<2x128xf32>
    %c57 = arith.constant 57 : index
    %268 = memref.load %arg2[%c57] : memref<173xf32, #tpu.memory_space<smem>>
    %269 = vector.broadcast %268 : f32 to vector<2x128xf32>
    %270 = arith.mulf %263, %269 : vector<2x128xf32>
    %271 = arith.addf %260, %270 : vector<2x128xf32>
    %272 = arith.mulf %7, %9 : vector<2x128xf32>
    %273 = arith.mulf %23, %25 : vector<2x128xf32>
    %274 = arith.addf %272, %273 : vector<2x128xf32>
    %c22 = arith.constant 22 : index
    %275 = memref.load %arg2[%c22] : memref<173xf32, #tpu.memory_space<smem>>
    %276 = vector.broadcast %275 : f32 to vector<2x128xf32>
    %277 = arith.mulf %274, %276 : vector<2x128xf32>
    %278 = arith.addf %267, %277 : vector<2x128xf32>
    %c58 = arith.constant 58 : index
    %279 = memref.load %arg2[%c58] : memref<173xf32, #tpu.memory_space<smem>>
    %280 = vector.broadcast %279 : f32 to vector<2x128xf32>
    %281 = arith.mulf %274, %280 : vector<2x128xf32>
    %282 = arith.addf %271, %281 : vector<2x128xf32>
    %283 = arith.mulf %7, %11 : vector<2x128xf32>
    %284 = arith.mulf %23, %27 : vector<2x128xf32>
    %285 = arith.addf %283, %284 : vector<2x128xf32>
    %c23 = arith.constant 23 : index
    %286 = memref.load %arg2[%c23] : memref<173xf32, #tpu.memory_space<smem>>
    %287 = vector.broadcast %286 : f32 to vector<2x128xf32>
    %288 = arith.mulf %285, %287 : vector<2x128xf32>
    %289 = arith.addf %278, %288 : vector<2x128xf32>
    %c59 = arith.constant 59 : index
    %290 = memref.load %arg2[%c59] : memref<173xf32, #tpu.memory_space<smem>>
    %291 = vector.broadcast %290 : f32 to vector<2x128xf32>
    %292 = arith.mulf %285, %291 : vector<2x128xf32>
    %293 = arith.addf %282, %292 : vector<2x128xf32>
    %294 = arith.mulf %7, %13 : vector<2x128xf32>
    %295 = arith.mulf %23, %29 : vector<2x128xf32>
    %296 = arith.addf %294, %295 : vector<2x128xf32>
    %c24 = arith.constant 24 : index
    %297 = memref.load %arg2[%c24] : memref<173xf32, #tpu.memory_space<smem>>
    %298 = vector.broadcast %297 : f32 to vector<2x128xf32>
    %299 = arith.mulf %296, %298 : vector<2x128xf32>
    %300 = arith.addf %289, %299 : vector<2x128xf32>
    %c60 = arith.constant 60 : index
    %301 = memref.load %arg2[%c60] : memref<173xf32, #tpu.memory_space<smem>>
    %302 = vector.broadcast %301 : f32 to vector<2x128xf32>
    %303 = arith.mulf %296, %302 : vector<2x128xf32>
    %304 = arith.addf %293, %303 : vector<2x128xf32>
    %305 = arith.mulf %7, %15 : vector<2x128xf32>
    %306 = arith.mulf %23, %31 : vector<2x128xf32>
    %307 = arith.addf %305, %306 : vector<2x128xf32>
    %c25 = arith.constant 25 : index
    %308 = memref.load %arg2[%c25] : memref<173xf32, #tpu.memory_space<smem>>
    %309 = vector.broadcast %308 : f32 to vector<2x128xf32>
    %310 = arith.mulf %307, %309 : vector<2x128xf32>
    %311 = arith.addf %300, %310 : vector<2x128xf32>
    %c61 = arith.constant 61 : index
    %312 = memref.load %arg2[%c61] : memref<173xf32, #tpu.memory_space<smem>>
    %313 = vector.broadcast %312 : f32 to vector<2x128xf32>
    %314 = arith.mulf %307, %313 : vector<2x128xf32>
    %315 = arith.addf %304, %314 : vector<2x128xf32>
    %316 = arith.mulf %9, %9 : vector<2x128xf32>
    %317 = arith.mulf %25, %25 : vector<2x128xf32>
    %318 = arith.addf %316, %317 : vector<2x128xf32>
    %c26 = arith.constant 26 : index
    %319 = memref.load %arg2[%c26] : memref<173xf32, #tpu.memory_space<smem>>
    %320 = vector.broadcast %319 : f32 to vector<2x128xf32>
    %321 = arith.mulf %318, %320 : vector<2x128xf32>
    %322 = arith.addf %311, %321 : vector<2x128xf32>
    %c62 = arith.constant 62 : index
    %323 = memref.load %arg2[%c62] : memref<173xf32, #tpu.memory_space<smem>>
    %324 = vector.broadcast %323 : f32 to vector<2x128xf32>
    %325 = arith.mulf %318, %324 : vector<2x128xf32>
    %326 = arith.addf %315, %325 : vector<2x128xf32>
    %327 = arith.mulf %9, %11 : vector<2x128xf32>
    %328 = arith.mulf %25, %27 : vector<2x128xf32>
    %329 = arith.addf %327, %328 : vector<2x128xf32>
    %c27 = arith.constant 27 : index
    %330 = memref.load %arg2[%c27] : memref<173xf32, #tpu.memory_space<smem>>
    %331 = vector.broadcast %330 : f32 to vector<2x128xf32>
    %332 = arith.mulf %329, %331 : vector<2x128xf32>
    %333 = arith.addf %322, %332 : vector<2x128xf32>
    %c63 = arith.constant 63 : index
    %334 = memref.load %arg2[%c63] : memref<173xf32, #tpu.memory_space<smem>>
    %335 = vector.broadcast %334 : f32 to vector<2x128xf32>
    %336 = arith.mulf %329, %335 : vector<2x128xf32>
    %337 = arith.addf %326, %336 : vector<2x128xf32>
    %338 = arith.mulf %9, %13 : vector<2x128xf32>
    %339 = arith.mulf %25, %29 : vector<2x128xf32>
    %340 = arith.addf %338, %339 : vector<2x128xf32>
    %c28 = arith.constant 28 : index
    %341 = memref.load %arg2[%c28] : memref<173xf32, #tpu.memory_space<smem>>
    %342 = vector.broadcast %341 : f32 to vector<2x128xf32>
    %343 = arith.mulf %340, %342 : vector<2x128xf32>
    %344 = arith.addf %333, %343 : vector<2x128xf32>
    %c64 = arith.constant 64 : index
    %345 = memref.load %arg2[%c64] : memref<173xf32, #tpu.memory_space<smem>>
    %346 = vector.broadcast %345 : f32 to vector<2x128xf32>
    %347 = arith.mulf %340, %346 : vector<2x128xf32>
    %348 = arith.addf %337, %347 : vector<2x128xf32>
    %349 = arith.mulf %9, %15 : vector<2x128xf32>
    %350 = arith.mulf %25, %31 : vector<2x128xf32>
    %351 = arith.addf %349, %350 : vector<2x128xf32>
    %c29 = arith.constant 29 : index
    %352 = memref.load %arg2[%c29] : memref<173xf32, #tpu.memory_space<smem>>
    %353 = vector.broadcast %352 : f32 to vector<2x128xf32>
    %354 = arith.mulf %351, %353 : vector<2x128xf32>
    %355 = arith.addf %344, %354 : vector<2x128xf32>
    %c65 = arith.constant 65 : index
    %356 = memref.load %arg2[%c65] : memref<173xf32, #tpu.memory_space<smem>>
    %357 = vector.broadcast %356 : f32 to vector<2x128xf32>
    %358 = arith.mulf %351, %357 : vector<2x128xf32>
    %359 = arith.addf %348, %358 : vector<2x128xf32>
    %360 = arith.mulf %11, %11 : vector<2x128xf32>
    %361 = arith.mulf %27, %27 : vector<2x128xf32>
    %362 = arith.addf %360, %361 : vector<2x128xf32>
    %c30 = arith.constant 30 : index
    %363 = memref.load %arg2[%c30] : memref<173xf32, #tpu.memory_space<smem>>
    %364 = vector.broadcast %363 : f32 to vector<2x128xf32>
    %365 = arith.mulf %362, %364 : vector<2x128xf32>
    %366 = arith.addf %355, %365 : vector<2x128xf32>
    %c66 = arith.constant 66 : index
    %367 = memref.load %arg2[%c66] : memref<173xf32, #tpu.memory_space<smem>>
    %368 = vector.broadcast %367 : f32 to vector<2x128xf32>
    %369 = arith.mulf %362, %368 : vector<2x128xf32>
    %370 = arith.addf %359, %369 : vector<2x128xf32>
    %371 = arith.mulf %11, %13 : vector<2x128xf32>
    %372 = arith.mulf %27, %29 : vector<2x128xf32>
    %373 = arith.addf %371, %372 : vector<2x128xf32>
    %c31 = arith.constant 31 : index
    %374 = memref.load %arg2[%c31] : memref<173xf32, #tpu.memory_space<smem>>
    %375 = vector.broadcast %374 : f32 to vector<2x128xf32>
    %376 = arith.mulf %373, %375 : vector<2x128xf32>
    %377 = arith.addf %366, %376 : vector<2x128xf32>
    %c67 = arith.constant 67 : index
    %378 = memref.load %arg2[%c67] : memref<173xf32, #tpu.memory_space<smem>>
    %379 = vector.broadcast %378 : f32 to vector<2x128xf32>
    %380 = arith.mulf %373, %379 : vector<2x128xf32>
    %381 = arith.addf %370, %380 : vector<2x128xf32>
    %382 = arith.mulf %11, %15 : vector<2x128xf32>
    %383 = arith.mulf %27, %31 : vector<2x128xf32>
    %384 = arith.addf %382, %383 : vector<2x128xf32>
    %c32 = arith.constant 32 : index
    %385 = memref.load %arg2[%c32] : memref<173xf32, #tpu.memory_space<smem>>
    %386 = vector.broadcast %385 : f32 to vector<2x128xf32>
    %387 = arith.mulf %384, %386 : vector<2x128xf32>
    %388 = arith.addf %377, %387 : vector<2x128xf32>
    %c68 = arith.constant 68 : index
    %389 = memref.load %arg2[%c68] : memref<173xf32, #tpu.memory_space<smem>>
    %390 = vector.broadcast %389 : f32 to vector<2x128xf32>
    %391 = arith.mulf %384, %390 : vector<2x128xf32>
    %392 = arith.addf %381, %391 : vector<2x128xf32>
    %393 = arith.mulf %13, %13 : vector<2x128xf32>
    %394 = arith.mulf %29, %29 : vector<2x128xf32>
    %395 = arith.addf %393, %394 : vector<2x128xf32>
    %c33 = arith.constant 33 : index
    %396 = memref.load %arg2[%c33] : memref<173xf32, #tpu.memory_space<smem>>
    %397 = vector.broadcast %396 : f32 to vector<2x128xf32>
    %398 = arith.mulf %395, %397 : vector<2x128xf32>
    %399 = arith.addf %388, %398 : vector<2x128xf32>
    %c69 = arith.constant 69 : index
    %400 = memref.load %arg2[%c69] : memref<173xf32, #tpu.memory_space<smem>>
    %401 = vector.broadcast %400 : f32 to vector<2x128xf32>
    %402 = arith.mulf %395, %401 : vector<2x128xf32>
    %403 = arith.addf %392, %402 : vector<2x128xf32>
    %404 = arith.mulf %13, %15 : vector<2x128xf32>
    %405 = arith.mulf %29, %31 : vector<2x128xf32>
    %406 = arith.addf %404, %405 : vector<2x128xf32>
    %c34 = arith.constant 34 : index
    %407 = memref.load %arg2[%c34] : memref<173xf32, #tpu.memory_space<smem>>
    %408 = vector.broadcast %407 : f32 to vector<2x128xf32>
    %409 = arith.mulf %406, %408 : vector<2x128xf32>
    %410 = arith.addf %399, %409 : vector<2x128xf32>
    %c70 = arith.constant 70 : index
    %411 = memref.load %arg2[%c70] : memref<173xf32, #tpu.memory_space<smem>>
    %412 = vector.broadcast %411 : f32 to vector<2x128xf32>
    %413 = arith.mulf %406, %412 : vector<2x128xf32>
    %414 = arith.addf %403, %413 : vector<2x128xf32>
    %415 = arith.mulf %15, %15 : vector<2x128xf32>
    %416 = arith.mulf %31, %31 : vector<2x128xf32>
    %417 = arith.addf %415, %416 : vector<2x128xf32>
    %c35 = arith.constant 35 : index
    %418 = memref.load %arg2[%c35] : memref<173xf32, #tpu.memory_space<smem>>
    %419 = vector.broadcast %418 : f32 to vector<2x128xf32>
    %420 = arith.mulf %417, %419 : vector<2x128xf32>
    %421 = arith.addf %410, %420 : vector<2x128xf32>
    %c71 = arith.constant 71 : index
    %422 = memref.load %arg2[%c71] : memref<173xf32, #tpu.memory_space<smem>>
    %423 = vector.broadcast %422 : f32 to vector<2x128xf32>
    %424 = arith.mulf %417, %423 : vector<2x128xf32>
    %425 = arith.addf %414, %424 : vector<2x128xf32>
    %c72 = arith.constant 72 : index
    %426 = memref.load %arg2[%c72] : memref<173xf32, #tpu.memory_space<smem>>
    %427 = vector.broadcast %426 : f32 to vector<2x128xf32>
    %428 = arith.addf %421, %427 : vector<2x128xf32>
    %c73 = arith.constant 73 : index
    %429 = memref.load %arg2[%c73] : memref<173xf32, #tpu.memory_space<smem>>
    %430 = vector.broadcast %429 : f32 to vector<2x128xf32>
    %431 = arith.addf %425, %430 : vector<2x128xf32>
    %432 = math.tanh %428 : vector<2x128xf32>
    %433 = math.tanh %431 : vector<2x128xf32>
    %c0_64 = arith.constant 0 : index
    %c8_65 = arith.constant 8 : index
    %c0_66 = arith.constant 0 : index
    %c0_67 = arith.constant 0 : index
    %434 = vector.load %arg1[%c0_64, %c8_65, %c0_66, %c0_67] : memref<2x18x2x128xf32, #tpu.memory_space<vmem>>, vector<1x1x2x128xf32>
    %435 = vector.shape_cast %434 : vector<1x1x2x128xf32> to vector<2x128xf32>
    %c0_68 = arith.constant 0 : index
    %c9_69 = arith.constant 9 : index
    %c0_70 = arith.constant 0 : index
    %c0_71 = arith.constant 0 : index
    %436 = vector.load %arg1[%c0_68, %c9_69, %c0_70, %c0_71] : memref<2x18x2x128xf32, #tpu.memory_space<vmem>>, vector<1x1x2x128xf32>
    %437 = vector.shape_cast %436 : vector<1x1x2x128xf32> to vector<2x128xf32>
    %c0_72 = arith.constant 0 : index
    %c10_73 = arith.constant 10 : index
    %c0_74 = arith.constant 0 : index
    %c0_75 = arith.constant 0 : index
    %438 = vector.load %arg1[%c0_72, %c10_73, %c0_74, %c0_75] : memref<2x18x2x128xf32, #tpu.memory_space<vmem>>, vector<1x1x2x128xf32>
    %439 = vector.shape_cast %438 : vector<1x1x2x128xf32> to vector<2x128xf32>
    %c0_76 = arith.constant 0 : index
    %c11_77 = arith.constant 11 : index
    %c0_78 = arith.constant 0 : index
    %c0_79 = arith.constant 0 : index
    %440 = vector.load %arg1[%c0_76, %c11_77, %c0_78, %c0_79] : memref<2x18x2x128xf32, #tpu.memory_space<vmem>>, vector<1x1x2x128xf32>
    %441 = vector.shape_cast %440 : vector<1x1x2x128xf32> to vector<2x128xf32>
    %c1_80 = arith.constant 1 : index
    %c8_81 = arith.constant 8 : index
    %c0_82 = arith.constant 0 : index
    %c0_83 = arith.constant 0 : index
    %442 = vector.load %arg1[%c1_80, %c8_81, %c0_82, %c0_83] : memref<2x18x2x128xf32, #tpu.memory_space<vmem>>, vector<1x1x2x128xf32>
    %443 = vector.shape_cast %442 : vector<1x1x2x128xf32> to vector<2x128xf32>
    %c1_84 = arith.constant 1 : index
    %c9_85 = arith.constant 9 : index
    %c0_86 = arith.constant 0 : index
    %c0_87 = arith.constant 0 : index
    %444 = vector.load %arg1[%c1_84, %c9_85, %c0_86, %c0_87] : memref<2x18x2x128xf32, #tpu.memory_space<vmem>>, vector<1x1x2x128xf32>
    %445 = vector.shape_cast %444 : vector<1x1x2x128xf32> to vector<2x128xf32>
    %c1_88 = arith.constant 1 : index
    %c10_89 = arith.constant 10 : index
    %c0_90 = arith.constant 0 : index
    %c0_91 = arith.constant 0 : index
    %446 = vector.load %arg1[%c1_88, %c10_89, %c0_90, %c0_91] : memref<2x18x2x128xf32, #tpu.memory_space<vmem>>, vector<1x1x2x128xf32>
    %447 = vector.shape_cast %446 : vector<1x1x2x128xf32> to vector<2x128xf32>
    %c1_92 = arith.constant 1 : index
    %c11_93 = arith.constant 11 : index
    %c0_94 = arith.constant 0 : index
    %c0_95 = arith.constant 0 : index
    %448 = vector.load %arg1[%c1_92, %c11_93, %c0_94, %c0_95] : memref<2x18x2x128xf32, #tpu.memory_space<vmem>>, vector<1x1x2x128xf32>
    %449 = vector.shape_cast %448 : vector<1x1x2x128xf32> to vector<2x128xf32>
    %450 = arith.mulf %435, %435 : vector<2x128xf32>
    %451 = arith.mulf %443, %443 : vector<2x128xf32>
    %452 = arith.addf %450, %451 : vector<2x128xf32>
    %c74 = arith.constant 74 : index
    %453 = memref.load %arg2[%c74] : memref<173xf32, #tpu.memory_space<smem>>
    %454 = vector.broadcast %453 : f32 to vector<2x128xf32>
    %455 = arith.mulf %452, %454 : vector<2x128xf32>
    %c84 = arith.constant 84 : index
    %456 = memref.load %arg2[%c84] : memref<173xf32, #tpu.memory_space<smem>>
    %457 = vector.broadcast %456 : f32 to vector<2x128xf32>
    %458 = arith.mulf %452, %457 : vector<2x128xf32>
    %459 = arith.mulf %435, %437 : vector<2x128xf32>
    %460 = arith.mulf %443, %445 : vector<2x128xf32>
    %461 = arith.addf %459, %460 : vector<2x128xf32>
    %c75 = arith.constant 75 : index
    %462 = memref.load %arg2[%c75] : memref<173xf32, #tpu.memory_space<smem>>
    %463 = vector.broadcast %462 : f32 to vector<2x128xf32>
    %464 = arith.mulf %461, %463 : vector<2x128xf32>
    %465 = arith.addf %455, %464 : vector<2x128xf32>
    %c85 = arith.constant 85 : index
    %466 = memref.load %arg2[%c85] : memref<173xf32, #tpu.memory_space<smem>>
    %467 = vector.broadcast %466 : f32 to vector<2x128xf32>
    %468 = arith.mulf %461, %467 : vector<2x128xf32>
    %469 = arith.addf %458, %468 : vector<2x128xf32>
    %470 = arith.mulf %435, %439 : vector<2x128xf32>
    %471 = arith.mulf %443, %447 : vector<2x128xf32>
    %472 = arith.addf %470, %471 : vector<2x128xf32>
    %c76 = arith.constant 76 : index
    %473 = memref.load %arg2[%c76] : memref<173xf32, #tpu.memory_space<smem>>
    %474 = vector.broadcast %473 : f32 to vector<2x128xf32>
    %475 = arith.mulf %472, %474 : vector<2x128xf32>
    %476 = arith.addf %465, %475 : vector<2x128xf32>
    %c86 = arith.constant 86 : index
    %477 = memref.load %arg2[%c86] : memref<173xf32, #tpu.memory_space<smem>>
    %478 = vector.broadcast %477 : f32 to vector<2x128xf32>
    %479 = arith.mulf %472, %478 : vector<2x128xf32>
    %480 = arith.addf %469, %479 : vector<2x128xf32>
    %481 = arith.mulf %435, %441 : vector<2x128xf32>
    %482 = arith.mulf %443, %449 : vector<2x128xf32>
    %483 = arith.addf %481, %482 : vector<2x128xf32>
    %c77 = arith.constant 77 : index
    %484 = memref.load %arg2[%c77] : memref<173xf32, #tpu.memory_space<smem>>
    %485 = vector.broadcast %484 : f32 to vector<2x128xf32>
    %486 = arith.mulf %483, %485 : vector<2x128xf32>
    %487 = arith.addf %476, %486 : vector<2x128xf32>
    %c87 = arith.constant 87 : index
    %488 = memref.load %arg2[%c87] : memref<173xf32, #tpu.memory_space<smem>>
    %489 = vector.broadcast %488 : f32 to vector<2x128xf32>
    %490 = arith.mulf %483, %489 : vector<2x128xf32>
    %491 = arith.addf %480, %490 : vector<2x128xf32>
    %492 = arith.mulf %437, %437 : vector<2x128xf32>
    %493 = arith.mulf %445, %445 : vector<2x128xf32>
    %494 = arith.addf %492, %493 : vector<2x128xf32>
    %c78 = arith.constant 78 : index
    %495 = memref.load %arg2[%c78] : memref<173xf32, #tpu.memory_space<smem>>
    %496 = vector.broadcast %495 : f32 to vector<2x128xf32>
    %497 = arith.mulf %494, %496 : vector<2x128xf32>
    %498 = arith.addf %487, %497 : vector<2x128xf32>
    %c88 = arith.constant 88 : index
    %499 = memref.load %arg2[%c88] : memref<173xf32, #tpu.memory_space<smem>>
    %500 = vector.broadcast %499 : f32 to vector<2x128xf32>
    %501 = arith.mulf %494, %500 : vector<2x128xf32>
    %502 = arith.addf %491, %501 : vector<2x128xf32>
    %503 = arith.mulf %437, %439 : vector<2x128xf32>
    %504 = arith.mulf %445, %447 : vector<2x128xf32>
    %505 = arith.addf %503, %504 : vector<2x128xf32>
    %c79 = arith.constant 79 : index
    %506 = memref.load %arg2[%c79] : memref<173xf32, #tpu.memory_space<smem>>
    %507 = vector.broadcast %506 : f32 to vector<2x128xf32>
    %508 = arith.mulf %505, %507 : vector<2x128xf32>
    %509 = arith.addf %498, %508 : vector<2x128xf32>
    %c89 = arith.constant 89 : index
    %510 = memref.load %arg2[%c89] : memref<173xf32, #tpu.memory_space<smem>>
    %511 = vector.broadcast %510 : f32 to vector<2x128xf32>
    %512 = arith.mulf %505, %511 : vector<2x128xf32>
    %513 = arith.addf %502, %512 : vector<2x128xf32>
    %514 = arith.mulf %437, %441 : vector<2x128xf32>
    %515 = arith.mulf %445, %449 : vector<2x128xf32>
    %516 = arith.addf %514, %515 : vector<2x128xf32>
    %c80 = arith.constant 80 : index
    %517 = memref.load %arg2[%c80] : memref<173xf32, #tpu.memory_space<smem>>
    %518 = vector.broadcast %517 : f32 to vector<2x128xf32>
    %519 = arith.mulf %516, %518 : vector<2x128xf32>
    %520 = arith.addf %509, %519 : vector<2x128xf32>
    %c90 = arith.constant 90 : index
    %521 = memref.load %arg2[%c90] : memref<173xf32, #tpu.memory_space<smem>>
    %522 = vector.broadcast %521 : f32 to vector<2x128xf32>
    %523 = arith.mulf %516, %522 : vector<2x128xf32>
    %524 = arith.addf %513, %523 : vector<2x128xf32>
    %525 = arith.mulf %439, %439 : vector<2x128xf32>
    %526 = arith.mulf %447, %447 : vector<2x128xf32>
    %527 = arith.addf %525, %526 : vector<2x128xf32>
    %c81 = arith.constant 81 : index
    %528 = memref.load %arg2[%c81] : memref<173xf32, #tpu.memory_space<smem>>
    %529 = vector.broadcast %528 : f32 to vector<2x128xf32>
    %530 = arith.mulf %527, %529 : vector<2x128xf32>
    %531 = arith.addf %520, %530 : vector<2x128xf32>
    %c91 = arith.constant 91 : index
    %532 = memref.load %arg2[%c91] : memref<173xf32, #tpu.memory_space<smem>>
    %533 = vector.broadcast %532 : f32 to vector<2x128xf32>
    %534 = arith.mulf %527, %533 : vector<2x128xf32>
    %535 = arith.addf %524, %534 : vector<2x128xf32>
    %536 = arith.mulf %439, %441 : vector<2x128xf32>
    %537 = arith.mulf %447, %449 : vector<2x128xf32>
    %538 = arith.addf %536, %537 : vector<2x128xf32>
    %c82 = arith.constant 82 : index
    %539 = memref.load %arg2[%c82] : memref<173xf32, #tpu.memory_space<smem>>
    %540 = vector.broadcast %539 : f32 to vector<2x128xf32>
    %541 = arith.mulf %538, %540 : vector<2x128xf32>
    %542 = arith.addf %531, %541 : vector<2x128xf32>
    %c92 = arith.constant 92 : index
    %543 = memref.load %arg2[%c92] : memref<173xf32, #tpu.memory_space<smem>>
    %544 = vector.broadcast %543 : f32 to vector<2x128xf32>
    %545 = arith.mulf %538, %544 : vector<2x128xf32>
    %546 = arith.addf %535, %545 : vector<2x128xf32>
    %547 = arith.mulf %441, %441 : vector<2x128xf32>
    %548 = arith.mulf %449, %449 : vector<2x128xf32>
    %549 = arith.addf %547, %548 : vector<2x128xf32>
    %c83 = arith.constant 83 : index
    %550 = memref.load %arg2[%c83] : memref<173xf32, #tpu.memory_space<smem>>
    %551 = vector.broadcast %550 : f32 to vector<2x128xf32>
    %552 = arith.mulf %549, %551 : vector<2x128xf32>
    %553 = arith.addf %542, %552 : vector<2x128xf32>
    %c93 = arith.constant 93 : index
    %554 = memref.load %arg2[%c93] : memref<173xf32, #tpu.memory_space<smem>>
    %555 = vector.broadcast %554 : f32 to vector<2x128xf32>
    %556 = arith.mulf %549, %555 : vector<2x128xf32>
    %557 = arith.addf %546, %556 : vector<2x128xf32>
    %c94 = arith.constant 94 : index
    %558 = memref.load %arg2[%c94] : memref<173xf32, #tpu.memory_space<smem>>
    %559 = vector.broadcast %558 : f32 to vector<2x128xf32>
    %560 = arith.addf %553, %559 : vector<2x128xf32>
    %c95 = arith.constant 95 : index
    %561 = memref.load %arg2[%c95] : memref<173xf32, #tpu.memory_space<smem>>
    %562 = vector.broadcast %561 : f32 to vector<2x128xf32>
    %563 = arith.addf %557, %562 : vector<2x128xf32>
    %564 = math.tanh %560 : vector<2x128xf32>
    %565 = math.tanh %563 : vector<2x128xf32>
    %c0_96 = arith.constant 0 : index
    %c12_97 = arith.constant 12 : index
    %c0_98 = arith.constant 0 : index
    %c0_99 = arith.constant 0 : index
    %566 = vector.load %arg1[%c0_96, %c12_97, %c0_98, %c0_99] : memref<2x18x2x128xf32, #tpu.memory_space<vmem>>, vector<1x1x2x128xf32>
    %567 = vector.shape_cast %566 : vector<1x1x2x128xf32> to vector<2x128xf32>
    %c0_100 = arith.constant 0 : index
    %c13_101 = arith.constant 13 : index
    %c0_102 = arith.constant 0 : index
    %c0_103 = arith.constant 0 : index
    %568 = vector.load %arg1[%c0_100, %c13_101, %c0_102, %c0_103] : memref<2x18x2x128xf32, #tpu.memory_space<vmem>>, vector<1x1x2x128xf32>
    %569 = vector.shape_cast %568 : vector<1x1x2x128xf32> to vector<2x128xf32>
    %c1_104 = arith.constant 1 : index
    %c12_105 = arith.constant 12 : index
    %c0_106 = arith.constant 0 : index
    %c0_107 = arith.constant 0 : index
    %570 = vector.load %arg1[%c1_104, %c12_105, %c0_106, %c0_107] : memref<2x18x2x128xf32, #tpu.memory_space<vmem>>, vector<1x1x2x128xf32>
    %571 = vector.shape_cast %570 : vector<1x1x2x128xf32> to vector<2x128xf32>
    %c1_108 = arith.constant 1 : index
    %c13_109 = arith.constant 13 : index
    %c0_110 = arith.constant 0 : index
    %c0_111 = arith.constant 0 : index
    %572 = vector.load %arg1[%c1_108, %c13_109, %c0_110, %c0_111] : memref<2x18x2x128xf32, #tpu.memory_space<vmem>>, vector<1x1x2x128xf32>
    %573 = vector.shape_cast %572 : vector<1x1x2x128xf32> to vector<2x128xf32>
    %574 = arith.mulf %567, %567 : vector<2x128xf32>
    %575 = arith.mulf %571, %571 : vector<2x128xf32>
    %576 = arith.addf %574, %575 : vector<2x128xf32>
    %c96 = arith.constant 96 : index
    %577 = memref.load %arg2[%c96] : memref<173xf32, #tpu.memory_space<smem>>
    %578 = vector.broadcast %577 : f32 to vector<2x128xf32>
    %579 = arith.mulf %576, %578 : vector<2x128xf32>
    %c99 = arith.constant 99 : index
    %580 = memref.load %arg2[%c99] : memref<173xf32, #tpu.memory_space<smem>>
    %581 = vector.broadcast %580 : f32 to vector<2x128xf32>
    %582 = arith.mulf %576, %581 : vector<2x128xf32>
    %c102 = arith.constant 102 : index
    %583 = memref.load %arg2[%c102] : memref<173xf32, #tpu.memory_space<smem>>
    %584 = vector.broadcast %583 : f32 to vector<2x128xf32>
    %585 = arith.mulf %576, %584 : vector<2x128xf32>
    %586 = arith.mulf %567, %569 : vector<2x128xf32>
    %587 = arith.mulf %571, %573 : vector<2x128xf32>
    %588 = arith.addf %586, %587 : vector<2x128xf32>
    %c97 = arith.constant 97 : index
    %589 = memref.load %arg2[%c97] : memref<173xf32, #tpu.memory_space<smem>>
    %590 = vector.broadcast %589 : f32 to vector<2x128xf32>
    %591 = arith.mulf %588, %590 : vector<2x128xf32>
    %592 = arith.addf %579, %591 : vector<2x128xf32>
    %c100 = arith.constant 100 : index
    %593 = memref.load %arg2[%c100] : memref<173xf32, #tpu.memory_space<smem>>
    %594 = vector.broadcast %593 : f32 to vector<2x128xf32>
    %595 = arith.mulf %588, %594 : vector<2x128xf32>
    %596 = arith.addf %582, %595 : vector<2x128xf32>
    %c103 = arith.constant 103 : index
    %597 = memref.load %arg2[%c103] : memref<173xf32, #tpu.memory_space<smem>>
    %598 = vector.broadcast %597 : f32 to vector<2x128xf32>
    %599 = arith.mulf %588, %598 : vector<2x128xf32>
    %600 = arith.addf %585, %599 : vector<2x128xf32>
    %601 = arith.mulf %569, %569 : vector<2x128xf32>
    %602 = arith.mulf %573, %573 : vector<2x128xf32>
    %603 = arith.addf %601, %602 : vector<2x128xf32>
    %c98 = arith.constant 98 : index
    %604 = memref.load %arg2[%c98] : memref<173xf32, #tpu.memory_space<smem>>
    %605 = vector.broadcast %604 : f32 to vector<2x128xf32>
    %606 = arith.mulf %603, %605 : vector<2x128xf32>
    %607 = arith.addf %592, %606 : vector<2x128xf32>
    %c101 = arith.constant 101 : index
    %608 = memref.load %arg2[%c101] : memref<173xf32, #tpu.memory_space<smem>>
    %609 = vector.broadcast %608 : f32 to vector<2x128xf32>
    %610 = arith.mulf %603, %609 : vector<2x128xf32>
    %611 = arith.addf %596, %610 : vector<2x128xf32>
    %c104 = arith.constant 104 : index
    %612 = memref.load %arg2[%c104] : memref<173xf32, #tpu.memory_space<smem>>
    %613 = vector.broadcast %612 : f32 to vector<2x128xf32>
    %614 = arith.mulf %603, %613 : vector<2x128xf32>
    %615 = arith.addf %600, %614 : vector<2x128xf32>
    %c105 = arith.constant 105 : index
    %616 = memref.load %arg2[%c105] : memref<173xf32, #tpu.memory_space<smem>>
    %617 = vector.broadcast %616 : f32 to vector<2x128xf32>
    %618 = arith.addf %607, %617 : vector<2x128xf32>
    %c106 = arith.constant 106 : index
    %619 = memref.load %arg2[%c106] : memref<173xf32, #tpu.memory_space<smem>>
    %620 = vector.broadcast %619 : f32 to vector<2x128xf32>
    %621 = arith.addf %611, %620 : vector<2x128xf32>
    %c107 = arith.constant 107 : index
    %622 = memref.load %arg2[%c107] : memref<173xf32, #tpu.memory_space<smem>>
    %623 = vector.broadcast %622 : f32 to vector<2x128xf32>
    %624 = arith.addf %615, %623 : vector<2x128xf32>
    %625 = math.tanh %618 : vector<2x128xf32>
    %626 = math.tanh %621 : vector<2x128xf32>
    %627 = math.tanh %624 : vector<2x128xf32>
    %c108 = arith.constant 108 : index
    %628 = memref.load %arg2[%c108] : memref<173xf32, #tpu.memory_space<smem>>
    %629 = vector.broadcast %628 : f32 to vector<2x128xf32>
    %630 = arith.mulf %625, %629 : vector<2x128xf32>
    %c109 = arith.constant 109 : index
    %631 = memref.load %arg2[%c109] : memref<173xf32, #tpu.memory_space<smem>>
    %632 = vector.broadcast %631 : f32 to vector<2x128xf32>
    %633 = arith.mulf %626, %632 : vector<2x128xf32>
    %634 = arith.addf %630, %633 : vector<2x128xf32>
    %c110 = arith.constant 110 : index
    %635 = memref.load %arg2[%c110] : memref<173xf32, #tpu.memory_space<smem>>
    %636 = vector.broadcast %635 : f32 to vector<2x128xf32>
    %637 = arith.mulf %627, %636 : vector<2x128xf32>
    %638 = arith.addf %634, %637 : vector<2x128xf32>
    %c114 = arith.constant 114 : index
    %639 = memref.load %arg2[%c114] : memref<173xf32, #tpu.memory_space<smem>>
    %640 = vector.broadcast %639 : f32 to vector<2x128xf32>
    %641 = arith.addf %638, %640 : vector<2x128xf32>
    %c111 = arith.constant 111 : index
    %642 = memref.load %arg2[%c111] : memref<173xf32, #tpu.memory_space<smem>>
    %643 = vector.broadcast %642 : f32 to vector<2x128xf32>
    %644 = arith.mulf %625, %643 : vector<2x128xf32>
    %c112 = arith.constant 112 : index
    %645 = memref.load %arg2[%c112] : memref<173xf32, #tpu.memory_space<smem>>
    %646 = vector.broadcast %645 : f32 to vector<2x128xf32>
    %647 = arith.mulf %626, %646 : vector<2x128xf32>
    %648 = arith.addf %644, %647 : vector<2x128xf32>
    %c113 = arith.constant 113 : index
    %649 = memref.load %arg2[%c113] : memref<173xf32, #tpu.memory_space<smem>>
    %650 = vector.broadcast %649 : f32 to vector<2x128xf32>
    %651 = arith.mulf %627, %650 : vector<2x128xf32>
    %652 = arith.addf %648, %651 : vector<2x128xf32>
    %c115 = arith.constant 115 : index
    %653 = memref.load %arg2[%c115] : memref<173xf32, #tpu.memory_space<smem>>
    %654 = vector.broadcast %653 : f32 to vector<2x128xf32>
    %655 = arith.addf %652, %654 : vector<2x128xf32>
    %656 = math.tanh %641 : vector<2x128xf32>
    %657 = math.tanh %655 : vector<2x128xf32>
    %c0_112 = arith.constant 0 : index
    %c14_113 = arith.constant 14 : index
    %c0_114 = arith.constant 0 : index
    %c0_115 = arith.constant 0 : index
    %658 = vector.load %arg1[%c0_112, %c14_113, %c0_114, %c0_115] : memref<2x18x2x128xf32, #tpu.memory_space<vmem>>, vector<1x1x2x128xf32>
    %659 = vector.shape_cast %658 : vector<1x1x2x128xf32> to vector<2x128xf32>
    %c0_116 = arith.constant 0 : index
    %c15_117 = arith.constant 15 : index
    %c0_118 = arith.constant 0 : index
    %c0_119 = arith.constant 0 : index
    %660 = vector.load %arg1[%c0_116, %c15_117, %c0_118, %c0_119] : memref<2x18x2x128xf32, #tpu.memory_space<vmem>>, vector<1x1x2x128xf32>
    %661 = vector.shape_cast %660 : vector<1x1x2x128xf32> to vector<2x128xf32>
    %c0_120 = arith.constant 0 : index
    %c16_121 = arith.constant 16 : index
    %c0_122 = arith.constant 0 : index
    %c0_123 = arith.constant 0 : index
    %662 = vector.load %arg1[%c0_120, %c16_121, %c0_122, %c0_123] : memref<2x18x2x128xf32, #tpu.memory_space<vmem>>, vector<1x1x2x128xf32>
    %663 = vector.shape_cast %662 : vector<1x1x2x128xf32> to vector<2x128xf32>
    %c0_124 = arith.constant 0 : index
    %c17_125 = arith.constant 17 : index
    %c0_126 = arith.constant 0 : index
    %c0_127 = arith.constant 0 : index
    %664 = vector.load %arg1[%c0_124, %c17_125, %c0_126, %c0_127] : memref<2x18x2x128xf32, #tpu.memory_space<vmem>>, vector<1x1x2x128xf32>
    %665 = vector.shape_cast %664 : vector<1x1x2x128xf32> to vector<2x128xf32>
    %c1_128 = arith.constant 1 : index
    %c14_129 = arith.constant 14 : index
    %c0_130 = arith.constant 0 : index
    %c0_131 = arith.constant 0 : index
    %666 = vector.load %arg1[%c1_128, %c14_129, %c0_130, %c0_131] : memref<2x18x2x128xf32, #tpu.memory_space<vmem>>, vector<1x1x2x128xf32>
    %667 = vector.shape_cast %666 : vector<1x1x2x128xf32> to vector<2x128xf32>
    %c1_132 = arith.constant 1 : index
    %c15_133 = arith.constant 15 : index
    %c0_134 = arith.constant 0 : index
    %c0_135 = arith.constant 0 : index
    %668 = vector.load %arg1[%c1_132, %c15_133, %c0_134, %c0_135] : memref<2x18x2x128xf32, #tpu.memory_space<vmem>>, vector<1x1x2x128xf32>
    %669 = vector.shape_cast %668 : vector<1x1x2x128xf32> to vector<2x128xf32>
    %c1_136 = arith.constant 1 : index
    %c16_137 = arith.constant 16 : index
    %c0_138 = arith.constant 0 : index
    %c0_139 = arith.constant 0 : index
    %670 = vector.load %arg1[%c1_136, %c16_137, %c0_138, %c0_139] : memref<2x18x2x128xf32, #tpu.memory_space<vmem>>, vector<1x1x2x128xf32>
    %671 = vector.shape_cast %670 : vector<1x1x2x128xf32> to vector<2x128xf32>
    %c1_140 = arith.constant 1 : index
    %c17_141 = arith.constant 17 : index
    %c0_142 = arith.constant 0 : index
    %c0_143 = arith.constant 0 : index
    %672 = vector.load %arg1[%c1_140, %c17_141, %c0_142, %c0_143] : memref<2x18x2x128xf32, #tpu.memory_space<vmem>>, vector<1x1x2x128xf32>
    %673 = vector.shape_cast %672 : vector<1x1x2x128xf32> to vector<2x128xf32>
    %674 = arith.mulf %659, %659 : vector<2x128xf32>
    %675 = arith.mulf %667, %667 : vector<2x128xf32>
    %676 = arith.addf %674, %675 : vector<2x128xf32>
    %c116 = arith.constant 116 : index
    %677 = memref.load %arg2[%c116] : memref<173xf32, #tpu.memory_space<smem>>
    %678 = vector.broadcast %677 : f32 to vector<2x128xf32>
    %679 = arith.mulf %676, %678 : vector<2x128xf32>
    %c126 = arith.constant 126 : index
    %680 = memref.load %arg2[%c126] : memref<173xf32, #tpu.memory_space<smem>>
    %681 = vector.broadcast %680 : f32 to vector<2x128xf32>
    %682 = arith.mulf %676, %681 : vector<2x128xf32>
    %c136 = arith.constant 136 : index
    %683 = memref.load %arg2[%c136] : memref<173xf32, #tpu.memory_space<smem>>
    %684 = vector.broadcast %683 : f32 to vector<2x128xf32>
    %685 = arith.mulf %676, %684 : vector<2x128xf32>
    %686 = arith.mulf %659, %661 : vector<2x128xf32>
    %687 = arith.mulf %667, %669 : vector<2x128xf32>
    %688 = arith.addf %686, %687 : vector<2x128xf32>
    %c117 = arith.constant 117 : index
    %689 = memref.load %arg2[%c117] : memref<173xf32, #tpu.memory_space<smem>>
    %690 = vector.broadcast %689 : f32 to vector<2x128xf32>
    %691 = arith.mulf %688, %690 : vector<2x128xf32>
    %692 = arith.addf %679, %691 : vector<2x128xf32>
    %c127 = arith.constant 127 : index
    %693 = memref.load %arg2[%c127] : memref<173xf32, #tpu.memory_space<smem>>
    %694 = vector.broadcast %693 : f32 to vector<2x128xf32>
    %695 = arith.mulf %688, %694 : vector<2x128xf32>
    %696 = arith.addf %682, %695 : vector<2x128xf32>
    %c137 = arith.constant 137 : index
    %697 = memref.load %arg2[%c137] : memref<173xf32, #tpu.memory_space<smem>>
    %698 = vector.broadcast %697 : f32 to vector<2x128xf32>
    %699 = arith.mulf %688, %698 : vector<2x128xf32>
    %700 = arith.addf %685, %699 : vector<2x128xf32>
    %701 = arith.mulf %659, %663 : vector<2x128xf32>
    %702 = arith.mulf %667, %671 : vector<2x128xf32>
    %703 = arith.addf %701, %702 : vector<2x128xf32>
    %c118 = arith.constant 118 : index
    %704 = memref.load %arg2[%c118] : memref<173xf32, #tpu.memory_space<smem>>
    %705 = vector.broadcast %704 : f32 to vector<2x128xf32>
    %706 = arith.mulf %703, %705 : vector<2x128xf32>
    %707 = arith.addf %692, %706 : vector<2x128xf32>
    %c128 = arith.constant 128 : index
    %708 = memref.load %arg2[%c128] : memref<173xf32, #tpu.memory_space<smem>>
    %709 = vector.broadcast %708 : f32 to vector<2x128xf32>
    %710 = arith.mulf %703, %709 : vector<2x128xf32>
    %711 = arith.addf %696, %710 : vector<2x128xf32>
    %c138 = arith.constant 138 : index
    %712 = memref.load %arg2[%c138] : memref<173xf32, #tpu.memory_space<smem>>
    %713 = vector.broadcast %712 : f32 to vector<2x128xf32>
    %714 = arith.mulf %703, %713 : vector<2x128xf32>
    %715 = arith.addf %700, %714 : vector<2x128xf32>
    %716 = arith.mulf %659, %665 : vector<2x128xf32>
    %717 = arith.mulf %667, %673 : vector<2x128xf32>
    %718 = arith.addf %716, %717 : vector<2x128xf32>
    %c119 = arith.constant 119 : index
    %719 = memref.load %arg2[%c119] : memref<173xf32, #tpu.memory_space<smem>>
    %720 = vector.broadcast %719 : f32 to vector<2x128xf32>
    %721 = arith.mulf %718, %720 : vector<2x128xf32>
    %722 = arith.addf %707, %721 : vector<2x128xf32>
    %c129 = arith.constant 129 : index
    %723 = memref.load %arg2[%c129] : memref<173xf32, #tpu.memory_space<smem>>
    %724 = vector.broadcast %723 : f32 to vector<2x128xf32>
    %725 = arith.mulf %718, %724 : vector<2x128xf32>
    %726 = arith.addf %711, %725 : vector<2x128xf32>
    %c139 = arith.constant 139 : index
    %727 = memref.load %arg2[%c139] : memref<173xf32, #tpu.memory_space<smem>>
    %728 = vector.broadcast %727 : f32 to vector<2x128xf32>
    %729 = arith.mulf %718, %728 : vector<2x128xf32>
    %730 = arith.addf %715, %729 : vector<2x128xf32>
    %731 = arith.mulf %661, %661 : vector<2x128xf32>
    %732 = arith.mulf %669, %669 : vector<2x128xf32>
    %733 = arith.addf %731, %732 : vector<2x128xf32>
    %c120 = arith.constant 120 : index
    %734 = memref.load %arg2[%c120] : memref<173xf32, #tpu.memory_space<smem>>
    %735 = vector.broadcast %734 : f32 to vector<2x128xf32>
    %736 = arith.mulf %733, %735 : vector<2x128xf32>
    %737 = arith.addf %722, %736 : vector<2x128xf32>
    %c130 = arith.constant 130 : index
    %738 = memref.load %arg2[%c130] : memref<173xf32, #tpu.memory_space<smem>>
    %739 = vector.broadcast %738 : f32 to vector<2x128xf32>
    %740 = arith.mulf %733, %739 : vector<2x128xf32>
    %741 = arith.addf %726, %740 : vector<2x128xf32>
    %c140 = arith.constant 140 : index
    %742 = memref.load %arg2[%c140] : memref<173xf32, #tpu.memory_space<smem>>
    %743 = vector.broadcast %742 : f32 to vector<2x128xf32>
    %744 = arith.mulf %733, %743 : vector<2x128xf32>
    %745 = arith.addf %730, %744 : vector<2x128xf32>
    %746 = arith.mulf %661, %663 : vector<2x128xf32>
    %747 = arith.mulf %669, %671 : vector<2x128xf32>
    %748 = arith.addf %746, %747 : vector<2x128xf32>
    %c121 = arith.constant 121 : index
    %749 = memref.load %arg2[%c121] : memref<173xf32, #tpu.memory_space<smem>>
    %750 = vector.broadcast %749 : f32 to vector<2x128xf32>
    %751 = arith.mulf %748, %750 : vector<2x128xf32>
    %752 = arith.addf %737, %751 : vector<2x128xf32>
    %c131 = arith.constant 131 : index
    %753 = memref.load %arg2[%c131] : memref<173xf32, #tpu.memory_space<smem>>
    %754 = vector.broadcast %753 : f32 to vector<2x128xf32>
    %755 = arith.mulf %748, %754 : vector<2x128xf32>
    %756 = arith.addf %741, %755 : vector<2x128xf32>
    %c141 = arith.constant 141 : index
    %757 = memref.load %arg2[%c141] : memref<173xf32, #tpu.memory_space<smem>>
    %758 = vector.broadcast %757 : f32 to vector<2x128xf32>
    %759 = arith.mulf %748, %758 : vector<2x128xf32>
    %760 = arith.addf %745, %759 : vector<2x128xf32>
    %761 = arith.mulf %661, %665 : vector<2x128xf32>
    %762 = arith.mulf %669, %673 : vector<2x128xf32>
    %763 = arith.addf %761, %762 : vector<2x128xf32>
    %c122 = arith.constant 122 : index
    %764 = memref.load %arg2[%c122] : memref<173xf32, #tpu.memory_space<smem>>
    %765 = vector.broadcast %764 : f32 to vector<2x128xf32>
    %766 = arith.mulf %763, %765 : vector<2x128xf32>
    %767 = arith.addf %752, %766 : vector<2x128xf32>
    %c132 = arith.constant 132 : index
    %768 = memref.load %arg2[%c132] : memref<173xf32, #tpu.memory_space<smem>>
    %769 = vector.broadcast %768 : f32 to vector<2x128xf32>
    %770 = arith.mulf %763, %769 : vector<2x128xf32>
    %771 = arith.addf %756, %770 : vector<2x128xf32>
    %c142 = arith.constant 142 : index
    %772 = memref.load %arg2[%c142] : memref<173xf32, #tpu.memory_space<smem>>
    %773 = vector.broadcast %772 : f32 to vector<2x128xf32>
    %774 = arith.mulf %763, %773 : vector<2x128xf32>
    %775 = arith.addf %760, %774 : vector<2x128xf32>
    %776 = arith.mulf %663, %663 : vector<2x128xf32>
    %777 = arith.mulf %671, %671 : vector<2x128xf32>
    %778 = arith.addf %776, %777 : vector<2x128xf32>
    %c123 = arith.constant 123 : index
    %779 = memref.load %arg2[%c123] : memref<173xf32, #tpu.memory_space<smem>>
    %780 = vector.broadcast %779 : f32 to vector<2x128xf32>
    %781 = arith.mulf %778, %780 : vector<2x128xf32>
    %782 = arith.addf %767, %781 : vector<2x128xf32>
    %c133 = arith.constant 133 : index
    %783 = memref.load %arg2[%c133] : memref<173xf32, #tpu.memory_space<smem>>
    %784 = vector.broadcast %783 : f32 to vector<2x128xf32>
    %785 = arith.mulf %778, %784 : vector<2x128xf32>
    %786 = arith.addf %771, %785 : vector<2x128xf32>
    %c143 = arith.constant 143 : index
    %787 = memref.load %arg2[%c143] : memref<173xf32, #tpu.memory_space<smem>>
    %788 = vector.broadcast %787 : f32 to vector<2x128xf32>
    %789 = arith.mulf %778, %788 : vector<2x128xf32>
    %790 = arith.addf %775, %789 : vector<2x128xf32>
    %791 = arith.mulf %663, %665 : vector<2x128xf32>
    %792 = arith.mulf %671, %673 : vector<2x128xf32>
    %793 = arith.addf %791, %792 : vector<2x128xf32>
    %c124 = arith.constant 124 : index
    %794 = memref.load %arg2[%c124] : memref<173xf32, #tpu.memory_space<smem>>
    %795 = vector.broadcast %794 : f32 to vector<2x128xf32>
    %796 = arith.mulf %793, %795 : vector<2x128xf32>
    %797 = arith.addf %782, %796 : vector<2x128xf32>
    %c134 = arith.constant 134 : index
    %798 = memref.load %arg2[%c134] : memref<173xf32, #tpu.memory_space<smem>>
    %799 = vector.broadcast %798 : f32 to vector<2x128xf32>
    %800 = arith.mulf %793, %799 : vector<2x128xf32>
    %801 = arith.addf %786, %800 : vector<2x128xf32>
    %c144 = arith.constant 144 : index
    %802 = memref.load %arg2[%c144] : memref<173xf32, #tpu.memory_space<smem>>
    %803 = vector.broadcast %802 : f32 to vector<2x128xf32>
    %804 = arith.mulf %793, %803 : vector<2x128xf32>
    %805 = arith.addf %790, %804 : vector<2x128xf32>
    %806 = arith.mulf %665, %665 : vector<2x128xf32>
    %807 = arith.mulf %673, %673 : vector<2x128xf32>
    %808 = arith.addf %806, %807 : vector<2x128xf32>
    %c125 = arith.constant 125 : index
    %809 = memref.load %arg2[%c125] : memref<173xf32, #tpu.memory_space<smem>>
    %810 = vector.broadcast %809 : f32 to vector<2x128xf32>
    %811 = arith.mulf %808, %810 : vector<2x128xf32>
    %812 = arith.addf %797, %811 : vector<2x128xf32>
    %c135 = arith.constant 135 : index
    %813 = memref.load %arg2[%c135] : memref<173xf32, #tpu.memory_space<smem>>
    %814 = vector.broadcast %813 : f32 to vector<2x128xf32>
    %815 = arith.mulf %808, %814 : vector<2x128xf32>
    %816 = arith.addf %801, %815 : vector<2x128xf32>
    %c145 = arith.constant 145 : index
    %817 = memref.load %arg2[%c145] : memref<173xf32, #tpu.memory_space<smem>>
    %818 = vector.broadcast %817 : f32 to vector<2x128xf32>
    %819 = arith.mulf %808, %818 : vector<2x128xf32>
    %820 = arith.addf %805, %819 : vector<2x128xf32>
    %c146 = arith.constant 146 : index
    %821 = memref.load %arg2[%c146] : memref<173xf32, #tpu.memory_space<smem>>
    %822 = vector.broadcast %821 : f32 to vector<2x128xf32>
    %823 = arith.addf %812, %822 : vector<2x128xf32>
    %c147 = arith.constant 147 : index
    %824 = memref.load %arg2[%c147] : memref<173xf32, #tpu.memory_space<smem>>
    %825 = vector.broadcast %824 : f32 to vector<2x128xf32>
    %826 = arith.addf %816, %825 : vector<2x128xf32>
    %c148 = arith.constant 148 : index
    %827 = memref.load %arg2[%c148] : memref<173xf32, #tpu.memory_space<smem>>
    %828 = vector.broadcast %827 : f32 to vector<2x128xf32>
    %829 = arith.addf %820, %828 : vector<2x128xf32>
    %830 = math.tanh %823 : vector<2x128xf32>
    %831 = math.tanh %826 : vector<2x128xf32>
    %832 = math.tanh %829 : vector<2x128xf32>
    %c149 = arith.constant 149 : index
    %833 = memref.load %arg2[%c149] : memref<173xf32, #tpu.memory_space<smem>>
    %834 = vector.broadcast %833 : f32 to vector<2x128xf32>
    %835 = arith.mulf %830, %834 : vector<2x128xf32>
    %c150 = arith.constant 150 : index
    %836 = memref.load %arg2[%c150] : memref<173xf32, #tpu.memory_space<smem>>
    %837 = vector.broadcast %836 : f32 to vector<2x128xf32>
    %838 = arith.mulf %831, %837 : vector<2x128xf32>
    %839 = arith.addf %835, %838 : vector<2x128xf32>
    %c151 = arith.constant 151 : index
    %840 = memref.load %arg2[%c151] : memref<173xf32, #tpu.memory_space<smem>>
    %841 = vector.broadcast %840 : f32 to vector<2x128xf32>
    %842 = arith.mulf %832, %841 : vector<2x128xf32>
    %843 = arith.addf %839, %842 : vector<2x128xf32>
    %c155 = arith.constant 155 : index
    %844 = memref.load %arg2[%c155] : memref<173xf32, #tpu.memory_space<smem>>
    %845 = vector.broadcast %844 : f32 to vector<2x128xf32>
    %846 = arith.addf %843, %845 : vector<2x128xf32>
    %c152 = arith.constant 152 : index
    %847 = memref.load %arg2[%c152] : memref<173xf32, #tpu.memory_space<smem>>
    %848 = vector.broadcast %847 : f32 to vector<2x128xf32>
    %849 = arith.mulf %830, %848 : vector<2x128xf32>
    %c153 = arith.constant 153 : index
    %850 = memref.load %arg2[%c153] : memref<173xf32, #tpu.memory_space<smem>>
    %851 = vector.broadcast %850 : f32 to vector<2x128xf32>
    %852 = arith.mulf %831, %851 : vector<2x128xf32>
    %853 = arith.addf %849, %852 : vector<2x128xf32>
    %c154 = arith.constant 154 : index
    %854 = memref.load %arg2[%c154] : memref<173xf32, #tpu.memory_space<smem>>
    %855 = vector.broadcast %854 : f32 to vector<2x128xf32>
    %856 = arith.mulf %832, %855 : vector<2x128xf32>
    %857 = arith.addf %853, %856 : vector<2x128xf32>
    %c156 = arith.constant 156 : index
    %858 = memref.load %arg2[%c156] : memref<173xf32, #tpu.memory_space<smem>>
    %859 = vector.broadcast %858 : f32 to vector<2x128xf32>
    %860 = arith.addf %857, %859 : vector<2x128xf32>
    %861 = math.tanh %846 : vector<2x128xf32>
    %862 = math.tanh %860 : vector<2x128xf32>
    %c157 = arith.constant 157 : index
    %863 = memref.load %arg2[%c157] : memref<173xf32, #tpu.memory_space<smem>>
    %864 = vector.broadcast %863 : f32 to vector<2x128xf32>
    %865 = arith.mulf %432, %864 : vector<2x128xf32>
    %c158 = arith.constant 158 : index
    %866 = memref.load %arg2[%c158] : memref<173xf32, #tpu.memory_space<smem>>
    %867 = vector.broadcast %866 : f32 to vector<2x128xf32>
    %868 = arith.mulf %433, %867 : vector<2x128xf32>
    %869 = arith.addf %865, %868 : vector<2x128xf32>
    %c159 = arith.constant 159 : index
    %870 = memref.load %arg2[%c159] : memref<173xf32, #tpu.memory_space<smem>>
    %871 = vector.broadcast %870 : f32 to vector<2x128xf32>
    %872 = arith.mulf %564, %871 : vector<2x128xf32>
    %873 = arith.addf %869, %872 : vector<2x128xf32>
    %c160 = arith.constant 160 : index
    %874 = memref.load %arg2[%c160] : memref<173xf32, #tpu.memory_space<smem>>
    %875 = vector.broadcast %874 : f32 to vector<2x128xf32>
    %876 = arith.mulf %565, %875 : vector<2x128xf32>
    %877 = arith.addf %873, %876 : vector<2x128xf32>
    %c161 = arith.constant 161 : index
    %878 = memref.load %arg2[%c161] : memref<173xf32, #tpu.memory_space<smem>>
    %879 = vector.broadcast %878 : f32 to vector<2x128xf32>
    %880 = arith.mulf %432, %879 : vector<2x128xf32>
    %c162 = arith.constant 162 : index
    %881 = memref.load %arg2[%c162] : memref<173xf32, #tpu.memory_space<smem>>
    %882 = vector.broadcast %881 : f32 to vector<2x128xf32>
    %883 = arith.mulf %433, %882 : vector<2x128xf32>
    %884 = arith.addf %880, %883 : vector<2x128xf32>
    %c163 = arith.constant 163 : index
    %885 = memref.load %arg2[%c163] : memref<173xf32, #tpu.memory_space<smem>>
    %886 = vector.broadcast %885 : f32 to vector<2x128xf32>
    %887 = arith.mulf %564, %886 : vector<2x128xf32>
    %888 = arith.addf %884, %887 : vector<2x128xf32>
    %c164 = arith.constant 164 : index
    %889 = memref.load %arg2[%c164] : memref<173xf32, #tpu.memory_space<smem>>
    %890 = vector.broadcast %889 : f32 to vector<2x128xf32>
    %891 = arith.mulf %565, %890 : vector<2x128xf32>
    %892 = arith.addf %888, %891 : vector<2x128xf32>
    %c165 = arith.constant 165 : index
    %893 = memref.load %arg2[%c165] : memref<173xf32, #tpu.memory_space<smem>>
    %894 = vector.broadcast %893 : f32 to vector<2x128xf32>
    %895 = arith.mulf %432, %894 : vector<2x128xf32>
    %c166 = arith.constant 166 : index
    %896 = memref.load %arg2[%c166] : memref<173xf32, #tpu.memory_space<smem>>
    %897 = vector.broadcast %896 : f32 to vector<2x128xf32>
    %898 = arith.mulf %433, %897 : vector<2x128xf32>
    %899 = arith.addf %895, %898 : vector<2x128xf32>
    %c167 = arith.constant 167 : index
    %900 = memref.load %arg2[%c167] : memref<173xf32, #tpu.memory_space<smem>>
    %901 = vector.broadcast %900 : f32 to vector<2x128xf32>
    %902 = arith.mulf %564, %901 : vector<2x128xf32>
    %903 = arith.addf %899, %902 : vector<2x128xf32>
    %c168 = arith.constant 168 : index
    %904 = memref.load %arg2[%c168] : memref<173xf32, #tpu.memory_space<smem>>
    %905 = vector.broadcast %904 : f32 to vector<2x128xf32>
    %906 = arith.mulf %565, %905 : vector<2x128xf32>
    %907 = arith.addf %903, %906 : vector<2x128xf32>
    %c169 = arith.constant 169 : index
    %908 = memref.load %arg2[%c169] : memref<173xf32, #tpu.memory_space<smem>>
    %909 = vector.broadcast %908 : f32 to vector<2x128xf32>
    %910 = arith.mulf %432, %909 : vector<2x128xf32>
    %c170 = arith.constant 170 : index
    %911 = memref.load %arg2[%c170] : memref<173xf32, #tpu.memory_space<smem>>
    %912 = vector.broadcast %911 : f32 to vector<2x128xf32>
    %913 = arith.mulf %433, %912 : vector<2x128xf32>
    %914 = arith.addf %910, %913 : vector<2x128xf32>
    %c171 = arith.constant 171 : index
    %915 = memref.load %arg2[%c171] : memref<173xf32, #tpu.memory_space<smem>>
    %916 = vector.broadcast %915 : f32 to vector<2x128xf32>
    %917 = arith.mulf %564, %916 : vector<2x128xf32>
    %918 = arith.addf %914, %917 : vector<2x128xf32>
    %c172 = arith.constant 172 : index
    %919 = memref.load %arg2[%c172] : memref<173xf32, #tpu.memory_space<smem>>
    %920 = vector.broadcast %919 : f32 to vector<2x128xf32>
    %921 = arith.mulf %565, %920 : vector<2x128xf32>
    %922 = arith.addf %918, %921 : vector<2x128xf32>
    %923 = arith.mulf %656, %877 : vector<2x128xf32>
    %924 = arith.mulf %657, %892 : vector<2x128xf32>
    %925 = arith.addf %923, %924 : vector<2x128xf32>
    %926 = arith.mulf %861, %907 : vector<2x128xf32>
    %927 = arith.addf %925, %926 : vector<2x128xf32>
    %928 = arith.mulf %862, %922 : vector<2x128xf32>
    %929 = arith.addf %927, %928 : vector<2x128xf32>
    %c0_144 = arith.constant 0 : index
    %c0_145 = arith.constant 0 : index
    %930 = vector.load %arg3[%c0_144, %c0_145] : memref<2x128xf32, #tpu.memory_space<vmem>>, vector<2x128xf32>
    tpu.vector_store %arg3[%c0_144, %c0_145], %929 {strides = array<i32>} : memref<2x128xf32, #tpu.memory_space<vmem>>, vector<2x128xf32>,
    return
  }
  func.func @transform_0(%arg0: i32) -> (i32, i32, i32, i32) {
    %c0_i32 = arith.constant 0 : i32
    %c0_i32_0 = arith.constant 0 : i32
    %c0_i32_1 = arith.constant 0 : i32
    %c0_i32_2 = arith.constant 0 : i32
    return %c0_i32, %c0_i32_0, %arg0, %c0_i32_1 : i32, i32, i32, i32
  }
  func.func @transform_1(%arg0: i32) -> i32 {
    %c0_i32 = arith.constant 0 : i32
    %c0_i32_0 = arith.constant 0 : i32
    return %c0_i32 : i32
  }
  func.func @transform_2(%arg0: i32) -> (i32, i32) {
    %c0_i32 = arith.constant 0 : i32
    %c0_i32_0 = arith.constant 0 : i32
    return %arg0, %c0_i32 : i32, i32
  }
}

</mosaic_0001>

<llo_original>
// kernel: tpu_custom_call.1
$region0: #{tpu_custom_call.1}
  #allocation0 [shape = 'u32[]', space=smem, size = 0x4, offset = 0x4, fixed_abs, tag = 'smem constant byte address 0x4 - core index']
  #allocation1 [shape = 'u32[72,128]{1,0:T(1,128)}', space=vmem, size = 0x9000, scoped, tag = 'internal scratch']
  %s0 = inlined_call_operand.hbm [shape: f32[2,18,2,128], index: 0, kind: input, shape index: {}]
  %s1 = inlined_call_operand.hbm [shape: f32[173], index: 1, kind: input, shape index: {}]
  %s2 = inlined_call_operand.hbm [shape: f32[2,128], index: 2, kind: output, shape index: {}]
  %s3 = sld [smem:[#allocation0]]
  $region26: #{tpu_custom_call.1} parent=0
    _
  %s5 = ssub.s32 1, %s3
  %s6 = scalar_select 0, %s5, %s3
  $region1: #{tpu_custom_call.1} parent=0
    #allocation2 [shape = 'u8[36864]{0}', space=vmem, size = 0x9000, scoped, tag = 'input window, operand 0, single buffered']
    #allocation3 [shape = 's32[1]{0}', space=sflag, size = 0x4, scoped, tag = 'scoped memory for tpu_custom_call.1']
    #allocation4 [shape = 's32[1]{0}', space=sflag, size = 0x4, scoped, tag = 'scoped memory for tpu_custom_call.1']
    #allocation5 [shape = 's32[1]{0}', space=sflag, size = 0x4, scoped, tag = 'scoped memory for tpu_custom_call.1']
    #allocation6 [shape = 'u8[1024]{0}', space=smem, size = 0x400, scoped, tag = 'input window, operand 1, single buffered']
    #allocation7 [shape = 'u8[1024]{0}', space=vmem, size = 0x400, scoped, tag = 'output window, operand 0, single buffered']
    %7 = vsyncpa [#allocation3], 0
    %8 = vsyncpa [#allocation5], 0
    %9 = vsyncpa [#allocation4], 0
    // Predicated region
    $region2: #{tpu_custom_call.1} parent=1 // pred_check
      _
    $region3: #{tpu_custom_call.1} parent=1 // pred_check_branch
      %11 = sbr.rel (0) target = $region5
    $region4: #{tpu_custom_call.1} parent=1 // pred_region
      %13 = vsyncadd [#allocation3], 0
      %s14 = sshll.u32 %s0, 4
      %s15 = int_to_ptr.hbm [resolvable:$true] %s14
      %s16 = sshll.u32 [#allocation2], 4
      %s17 = int_to_ptr.vmem [resolvable:$true] %s16
      %22 = dma.hbm_to_vmem [thread:$0]  %s15, 1152, %s17, [#allocation3], 32, 32, 2
    $region5: #{tpu_custom_call.1} parent=1 // pred_fallthru
      _
    // Predicated region
    $region6: #{tpu_custom_call.1} parent=1 // pred_check
      _
    $region7: #{tpu_custom_call.1} parent=1 // pred_check_branch
      %24 = sbr.rel (0) target = $region9
    $region8: #{tpu_custom_call.1} parent=1 // pred_region
      %26 = vsyncadd [#allocation5], 0
      %s28 = sshll.u32 %s1, 4
      %s29 = int_to_ptr.hbm [resolvable:$true] %s28
      %31 = dma.hbm_to_smem %s29, 32, [#allocation6], [#allocation5]
    $region9: #{tpu_custom_call.1} parent=1 // pred_fallthru
      _
    // Predicated region
    $region10: #{tpu_custom_call.1} parent=1 // pred_check
      _
    $region11: #{tpu_custom_call.1} parent=1 // pred_check_branch
      %33 = sbr.rel (0) target = $region13
    $region12: #{tpu_custom_call.1} parent=1 // pred_region
      %35 = dma.done [#allocation3], 1152
    $region13: #{tpu_custom_call.1} parent=1 // pred_fallthru
      _
    // Predicated region
    $region14: #{tpu_custom_call.1} parent=1 // pred_check
      _
    $region15: #{tpu_custom_call.1} parent=1 // pred_check_branch
      %37 = sbr.rel (0) target = $region17
    $region16: #{tpu_custom_call.1} parent=1 // pred_region
      %39 = dma.done [#allocation5], 32
    $region17: #{tpu_custom_call.1} parent=1 // pred_fallthru
      _
    %40 = sfence
    %v41 = vld [vmem:[#allocation2] sm:$0x3]
    %s42 = scalar_lea.vmem [#allocation2], 2
    %v43 = vld [vmem:[%s42] sm:$0x3]
    %s44 = scalar_lea.vmem [#allocation2], 4
    %v45 = vld [vmem:[%s44] sm:$0x3]
    %s46 = scalar_lea.vmem [#allocation2], 6
    %v47 = vld [vmem:[%s46] sm:$0x3]
    %s48 = scalar_lea.vmem [#allocation2], 8
    %v49 = vld [vmem:[%s48] sm:$0x3]
    %s50 = scalar_lea.vmem [#allocation2], 10
    %v51 = vld [vmem:[%s50] sm:$0x3]
    %s52 = scalar_lea.vmem [#allocation2], 12
    %v53 = vld [vmem:[%s52] sm:$0x3]
    %s54 = scalar_lea.vmem [#allocation2], 14
    %v55 = vld [vmem:[%s54] sm:$0x3]
    %s56 = scalar_lea.vmem [#allocation2], 36
    %v57 = vld [vmem:[%s56] sm:$0x3]
    %s58 = scalar_lea.vmem [#allocation2], 38
    %v59 = vld [vmem:[%s58] sm:$0x3]
    %s60 = scalar_lea.vmem [#allocation2], 40
    %v61 = vld [vmem:[%s60] sm:$0x3]
    %s62 = scalar_lea.vmem [#allocation2], 42
    %v63 = vld [vmem:[%s62] sm:$0x3]
    %s64 = scalar_lea.vmem [#allocation2], 44
    %v65 = vld [vmem:[%s64] sm:$0x3]
    %s66 = scalar_lea.vmem [#allocation2], 46
    %v67 = vld [vmem:[%s66] sm:$0x3]
    %s68 = scalar_lea.vmem [#allocation2], 48
    %v69 = vld [vmem:[%s68] sm:$0x3]
    %s70 = scalar_lea.vmem [#allocation2], 50
    %v71 = vld [vmem:[%s70] sm:$0x3]
    %v72 = vmul.f32 %v41, %v41
    %v73 = vmul.f32 %v57, %v57
    %v74 = vadd.f32 %v72, %v73
    %s75 = sld [smem:[#allocation6]]
    %v76 = vstv %s75
    %v77 = vmul.f32 %v74, %v76
    %s78 = sld [smem:[#allocation6 + $0x24]]
    %v79 = vstv %s78
    %v80 = vmul.f32 %v74, %v79
    %v81 = vmul.f32 %v41, %v43
    %v82 = vmul.f32 %v57, %v59
    %v83 = vadd.f32 %v81, %v82
    %s84 = sld [smem:[#allocation6 + $0x1]]
    %v85 = vstv %s84
    %v86 = vmul.f32 %v83, %v85
    %v87 = vadd.f32 %v77, %v86
    %s88 = sld [smem:[#allocation6 + $0x25]]
    %v89 = vstv %s88
    %v90 = vmul.f32 %v83, %v89
    %v91 = vadd.f32 %v80, %v90
    %v92 = vmul.f32 %v41, %v45
    %v93 = vmul.f32 %v57, %v61
    %v94 = vadd.f32 %v92, %v93
    %s95 = sld [smem:[#allocation6 + $0x2]]
    %v96 = vstv %s95
    %v97 = vmul.f32 %v94, %v96
    %v98 = vadd.f32 %v87, %v97
    %s99 = sld [smem:[#allocation6 + $0x26]]
    %v100 = vstv %s99
    %v101 = vmul.f32 %v94, %v100
    %v102 = vadd.f32 %v91, %v101
    %v103 = vmul.f32 %v41, %v47
    %v104 = vmul.f32 %v57, %v63
    %v105 = vadd.f32 %v103, %v104
    %s106 = sld [smem:[#allocation6 + $0x3]]
    %v107 = vstv %s106
    %v108 = vmul.f32 %v105, %v107
    %v109 = vadd.f32 %v98, %v108
    %s110 = sld [smem:[#allocation6 + $0x27]]
    %v111 = vstv %s110
    %v112 = vmul.f32 %v105, %v111
    %v113 = vadd.f32 %v102, %v112
    %v114 = vmul.f32 %v41, %v49
    %v115 = vmul.f32 %v57, %v65
    %v116 = vadd.f32 %v114, %v115
    %s117 = sld [smem:[#allocation6 + $0x4]]
    %v118 = vstv %s117
    %v119 = vmul.f32 %v116, %v118
    %v120 = vadd.f32 %v109, %v119
    %s121 = sld [smem:[#allocation6 + $0x28]]
    %v122 = vstv %s121
    %v123 = vmul.f32 %v116, %v122
    %v124 = vadd.f32 %v113, %v123
    %v125 = vmul.f32 %v41, %v51
    %v126 = vmul.f32 %v57, %v67
    %v127 = vadd.f32 %v125, %v126
    %s128 = sld [smem:[#allocation6 + $0x5]]
    %v129 = vstv %s128
    %v130 = vmul.f32 %v127, %v129
    %v131 = vadd.f32 %v120, %v130
    %s132 = sld [smem:[#allocation6 + $0x29]]
    %v133 = vstv %s132
    %v134 = vmul.f32 %v127, %v133
    %v135 = vadd.f32 %v124, %v134
    %v136 = vmul.f32 %v41, %v53
    %v137 = vmul.f32 %v57, %v69
    %v138 = vadd.f32 %v136, %v137
    %s139 = sld [smem:[#allocation6 + $0x6]]
    %v140 = vstv %s139
    %v141 = vmul.f32 %v138, %v140
    %v142 = vadd.f32 %v131, %v141
    %s143 = sld [smem:[#allocation6 + $0x2a]]
    %v144 = vstv %s143
    %v145 = vmul.f32 %v138, %v144
    %v146 = vadd.f32 %v135, %v145
    %v147 = vmul.f32 %v41, %v55
    %v148 = vmul.f32 %v57, %v71
    %v149 = vadd.f32 %v147, %v148
    %s150 = sld [smem:[#allocation6 + $0x7]]
    %v151 = vstv %s150
    %v152 = vmul.f32 %v149, %v151
    %v153 = vadd.f32 %v142, %v152
    %s154 = sld [smem:[#allocation6 + $0x2b]]
    %v155 = vstv %s154
    %v156 = vmul.f32 %v149, %v155
    %v157 = vadd.f32 %v146, %v156
    %v158 = vmul.f32 %v43, %v43
    %v159 = vmul.f32 %v59, %v59
    %v160 = vadd.f32 %v158, %v159
    %s161 = sld [smem:[#allocation6 + $0x8]]
    %v162 = vstv %s161
    %v163 = vmul.f32 %v160, %v162
    %v164 = vadd.f32 %v153, %v163
    %s165 = sld [smem:[#allocation6 + $0x2c]]
    %v166 = vstv %s165
    %v167 = vmul.f32 %v160, %v166
    %v168 = vadd.f32 %v157, %v167
    %v169 = vmul.f32 %v43, %v45
    %v170 = vmul.f32 %v59, %v61
    %v171 = vadd.f32 %v169, %v170
    %s172 = sld [smem:[#allocation6 + $0x9]]
    %v173 = vstv %s172
    %v174 = vmul.f32 %v171, %v173
    %v175 = vadd.f32 %v164, %v174
    %s176 = sld [smem:[#allocation6 + $0x2d]]
    %v177 = vstv %s176
    %v178 = vmul.f32 %v171, %v177
    %v179 = vadd.f32 %v168, %v178
    %v180 = vmul.f32 %v43, %v47
    %v181 = vmul.f32 %v59, %v63
    %v182 = vadd.f32 %v180, %v181
    %s183 = sld [smem:[#allocation6 + $0xa]]
    %v184 = vstv %s183
    %v185 = vmul.f32 %v182, %v184
    %v186 = vadd.f32 %v175, %v185
    %s187 = sld [smem:[#allocation6 + $0x2e]]
    %v188 = vstv %s187
    %v189 = vmul.f32 %v182, %v188
    %v190 = vadd.f32 %v179, %v189
    %v191 = vmul.f32 %v43, %v49
    %v192 = vmul.f32 %v59, %v65
    %v193 = vadd.f32 %v191, %v192
    %s194 = sld [smem:[#allocation6 + $0xb]]
    %v195 = vstv %s194
    %v196 = vmul.f32 %v193, %v195
    %v197 = vadd.f32 %v186, %v196
    %s198 = sld [smem:[#allocation6 + $0x2f]]
    %v199 = vstv %s198
    %v200 = vmul.f32 %v193, %v199
    %v201 = vadd.f32 %v190, %v200
    %v202 = vmul.f32 %v43, %v51
    %v203 = vmul.f32 %v59, %v67
    %v204 = vadd.f32 %v202, %v203
    %s205 = sld [smem:[#allocation6 + $0xc]]
    %v206 = vstv %s205
    %v207 = vmul.f32 %v204, %v206
    %v208 = vadd.f32 %v197, %v207
    %s209 = sld [smem:[#allocation6 + $0x30]]
    %v210 = vstv %s209
    %v211 = vmul.f32 %v204, %v210
    %v212 = vadd.f32 %v201, %v211
    %v213 = vmul.f32 %v43, %v53
    %v214 = vmul.f32 %v59, %v69
    %v215 = vadd.f32 %v213, %v214
    %s216 = sld [smem:[#allocation6 + $0xd]]
    %v217 = vstv %s216
    %v218 = vmul.f32 %v215, %v217
    %v219 = vadd.f32 %v208, %v218
    %s220 = sld [smem:[#allocation6 + $0x31]]
    %v221 = vstv %s220
    %v222 = vmul.f32 %v215, %v221
    %v223 = vadd.f32 %v212, %v222
    %v224 = vmul.f32 %v43, %v55
    %v225 = vmul.f32 %v59, %v71
    %v226 = vadd.f32 %v224, %v225
    %s227 = sld [smem:[#allocation6 + $0xe]]
    %v228 = vstv %s227
    %v229 = vmul.f32 %v226, %v228
    %v230 = vadd.f32 %v219, %v229
    %s231 = sld [smem:[#allocation6 + $0x32]]
    %v232 = vstv %s231
    %v233 = vmul.f32 %v226, %v232
    %v234 = vadd.f32 %v223, %v233
    %v235 = vmul.f32 %v45, %v45
    %v236 = vmul.f32 %v61, %v61
    %v237 = vadd.f32 %v235, %v236
    %s238 = sld [smem:[#allocation6 + $0xf]]
    %v239 = vstv %s238
    %v240 = vmul.f32 %v237, %v239
    %v241 = vadd.f32 %v230, %v240
    %s242 = sld [smem:[#allocation6 + $0x33]]
    %v243 = vstv %s242
    %v244 = vmul.f32 %v237, %v243
    %v245 = vadd.f32 %v234, %v244
    %v246 = vmul.f32 %v45, %v47
    %v247 = vmul.f32 %v61, %v63
    %v248 = vadd.f32 %v246, %v247
    %s249 = sld [smem:[#allocation6 + $0x10]]
    %v250 = vstv %s249
    %v251 = vmul.f32 %v248, %v250
    %v252 = vadd.f32 %v241, %v251
    %s253 = sld [smem:[#allocation6 + $0x34]]
    %v254 = vstv %s253
    %v255 = vmul.f32 %v248, %v254
    %v256 = vadd.f32 %v245, %v255
    %v257 = vmul.f32 %v45, %v49
    %v258 = vmul.f32 %v61, %v65
    %v259 = vadd.f32 %v257, %v258
    %s260 = sld [smem:[#allocation6 + $0x11]]
    %v261 = vstv %s260
    %v262 = vmul.f32 %v259, %v261
    %v263 = vadd.f32 %v252, %v262
    %s264 = sld [smem:[#allocation6 + $0x35]]
    %v265 = vstv %s264
    %v266 = vmul.f32 %v259, %v265
    %v267 = vadd.f32 %v256, %v266
    %v268 = vmul.f32 %v45, %v51
    %v269 = vmul.f32 %v61, %v67
    %v270 = vadd.f32 %v268, %v269
    %s271 = sld [smem:[#allocation6 + $0x12]]
    %v272 = vstv %s271
    %v273 = vmul.f32 %v270, %v272
    %v274 = vadd.f32 %v263, %v273
    %s275 = sld [smem:[#allocation6 + $0x36]]
    %v276 = vstv %s275
    %v277 = vmul.f32 %v270, %v276
    %v278 = vadd.f32 %v267, %v277
    %v279 = vmul.f32 %v45, %v53
    %v280 = vmul.f32 %v61, %v69
    %v281 = vadd.f32 %v279, %v280
    %s282 = sld [smem:[#allocation6 + $0x13]]
    %v283 = vstv %s282
    %v284 = vmul.f32 %v281, %v283
    %v285 = vadd.f32 %v274, %v284
    %s286 = sld [smem:[#allocation6 + $0x37]]
    %v287 = vstv %s286
    %v288 = vmul.f32 %v281, %v287
    %v289 = vadd.f32 %v278, %v288
    %v290 = vmul.f32 %v45, %v55
    %v291 = vmul.f32 %v61, %v71
    %v292 = vadd.f32 %v290, %v291
    %s293 = sld [smem:[#allocation6 + $0x14]]
    %v294 = vstv %s293
    %v295 = vmul.f32 %v292, %v294
    %v296 = vadd.f32 %v285, %v295
    %s297 = sld [smem:[#allocation6 + $0x38]]
    %v298 = vstv %s297
    %v299 = vmul.f32 %v292, %v298
    %v300 = vadd.f32 %v289, %v299
    %v301 = vmul.f32 %v47, %v47
    %v302 = vmul.f32 %v63, %v63
    %v303 = vadd.f32 %v301, %v302
    %s304 = sld [smem:[#allocation6 + $0x15]]
    %v305 = vstv %s304
    %v306 = vmul.f32 %v303, %v305
    %v307 = vadd.f32 %v296, %v306
    %s308 = sld [smem:[#allocation6 + $0x39]]
    %v309 = vstv %s308
    %v310 = vmul.f32 %v303, %v309
    %v311 = vadd.f32 %v300, %v310
    %v312 = vmul.f32 %v47, %v49
    %v313 = vmul.f32 %v63, %v65
    %v314 = vadd.f32 %v312, %v313
    %s315 = sld [smem:[#allocation6 + $0x16]]
    %v316 = vstv %s315
    %v317 = vmul.f32 %v314, %v316
    %v318 = vadd.f32 %v307, %v317
    %s319 = sld [smem:[#allocation6 + $0x3a]]
    %v320 = vstv %s319
    %v321 = vmul.f32 %v314, %v320
    %v322 = vadd.f32 %v311, %v321
    %v323 = vmul.f32 %v47, %v51
    %v324 = vmul.f32 %v63, %v67
    %v325 = vadd.f32 %v323, %v324
    %s326 = sld [smem:[#allocation6 + $0x17]]
    %v327 = vstv %s326
    %v328 = vmul.f32 %v325, %v327
    %v329 = vadd.f32 %v318, %v328
    %s330 = sld [smem:[#allocation6 + $0x3b]]
    %v331 = vstv %s330
    %v332 = vmul.f32 %v325, %v331
    %v333 = vadd.f32 %v322, %v332
    %v334 = vmul.f32 %v47, %v53
    %v335 = vmul.f32 %v63, %v69
    %v336 = vadd.f32 %v334, %v335
    %s337 = sld [smem:[#allocation6 + $0x18]]
    %v338 = vstv %s337
    %v339 = vmul.f32 %v336, %v338
    %v340 = vadd.f32 %v329, %v339
    %s341 = sld [smem:[#allocation6 + $0x3c]]
    %v342 = vstv %s341
    %v343 = vmul.f32 %v336, %v342
    %v344 = vadd.f32 %v333, %v343
    %v345 = vmul.f32 %v47, %v55
    %v346 = vmul.f32 %v63, %v71
    %v347 = vadd.f32 %v345, %v346
    %s348 = sld [smem:[#allocation6 + $0x19]]
    %v349 = vstv %s348
    %v350 = vmul.f32 %v347, %v349
    %v351 = vadd.f32 %v340, %v350
    %s352 = sld [smem:[#allocation6 + $0x3d]]
    %v353 = vstv %s352
    %v354 = vmul.f32 %v347, %v353
    %v355 = vadd.f32 %v344, %v354
    %v356 = vmul.f32 %v49, %v49
    %v357 = vmul.f32 %v65, %v65
    %v358 = vadd.f32 %v356, %v357
    %s359 = sld [smem:[#allocation6 + $0x1a]]
    %v360 = vstv %s359
    %v361 = vmul.f32 %v358, %v360
    %v362 = vadd.f32 %v351, %v361
    %s363 = sld [smem:[#allocation6 + $0x3e]]
    %v364 = vstv %s363
    %v365 = vmul.f32 %v358, %v364
    %v366 = vadd.f32 %v355, %v365
    %v367 = vmul.f32 %v49, %v51
    %v368 = vmul.f32 %v65, %v67
    %v369 = vadd.f32 %v367, %v368
    %s370 = sld [smem:[#allocation6 + $0x1b]]
    %v371 = vstv %s370
    %v372 = vmul.f32 %v369, %v371
    %v373 = vadd.f32 %v362, %v372
    %s374 = sld [smem:[#allocation6 + $0x3f]]
    %v375 = vstv %s374
    %v376 = vmul.f32 %v369, %v375
    %v377 = vadd.f32 %v366, %v376
    %v378 = vmul.f32 %v49, %v53
    %v379 = vmul.f32 %v65, %v69
    %v380 = vadd.f32 %v378, %v379
    %s381 = sld [smem:[#allocation6 + $0x1c]]
    %v382 = vstv %s381
    %v383 = vmul.f32 %v380, %v382
    %v384 = vadd.f32 %v373, %v383
    %s385 = sld [smem:[#allocation6 + $0x40]]
    %v386 = vstv %s385
    %v387 = vmul.f32 %v380, %v386
    %v388 = vadd.f32 %v377, %v387
    %v389 = vmul.f32 %v49, %v55
    %v390 = vmul.f32 %v65, %v71
    %v391 = vadd.f32 %v389, %v390
    %s392 = sld [smem:[#allocation6 + $0x1d]]
    %v393 = vstv %s392
    %v394 = vmul.f32 %v391, %v393
    %v395 = vadd.f32 %v384, %v394
    %s396 = sld [smem:[#allocation6 + $0x41]]
    %v397 = vstv %s396
    %v398 = vmul.f32 %v391, %v397
    %v399 = vadd.f32 %v388, %v398
    %v400 = vmul.f32 %v51, %v51
    %v401 = vmul.f32 %v67, %v67
    %v402 = vadd.f32 %v400, %v401
    %s403 = sld [smem:[#allocation6 + $0x1e]]
    %v404 = vstv %s403
    %v405 = vmul.f32 %v402, %v404
    %v406 = vadd.f32 %v395, %v405
    %s407 = sld [smem:[#allocation6 + $0x42]]
    %v408 = vstv %s407
    %v409 = vmul.f32 %v402, %v408
    %v410 = vadd.f32 %v399, %v409
    %v411 = vmul.f32 %v51, %v53
    %v412 = vmul.f32 %v67, %v69
    %v413 = vadd.f32 %v411, %v412
    %s414 = sld [smem:[#allocation6 + $0x1f]]
    %v415 = vstv %s414
    %v416 = vmul.f32 %v413, %v415
    %v417 = vadd.f32 %v406, %v416
    %s418 = sld [smem:[#allocation6 + $0x43]]
    %v419 = vstv %s418
    %v420 = vmul.f32 %v413, %v419
    %v421 = vadd.f32 %v410, %v420
    %v422 = vmul.f32 %v51, %v55
    %v423 = vmul.f32 %v67, %v71
    %v424 = vadd.f32 %v422, %v423
    %s425 = sld [smem:[#allocation6 + $0x20]]
    %v426 = vstv %s425
    %v427 = vmul.f32 %v424, %v426
    %v428 = vadd.f32 %v417, %v427
    %s429 = sld [smem:[#allocation6 + $0x44]]
    %v430 = vstv %s429
    %v431 = vmul.f32 %v424, %v430
    %v432 = vadd.f32 %v421, %v431
    %v433 = vmul.f32 %v53, %v53
    %v434 = vmul.f32 %v69, %v69
    %v435 = vadd.f32 %v433, %v434
    %s436 = sld [smem:[#allocation6 + $0x21]]
    %v437 = vstv %s436
    %v438 = vmul.f32 %v435, %v437
    %v439 = vadd.f32 %v428, %v438
    %s440 = sld [smem:[#allocation6 + $0x45]]
    %v441 = vstv %s440
    %v442 = vmul.f32 %v435, %v441
    %v443 = vadd.f32 %v432, %v442
    %v444 = vmul.f32 %v53, %v55
    %v445 = vmul.f32 %v69, %v71
    %v446 = vadd.f32 %v444, %v445
    %s447 = sld [smem:[#allocation6 + $0x22]]
    %v448 = vstv %s447
    %v449 = vmul.f32 %v446, %v448
    %v450 = vadd.f32 %v439, %v449
    %s451 = sld [smem:[#allocation6 + $0x46]]
    %v452 = vstv %s451
    %v453 = vmul.f32 %v446, %v452
    %v454 = vadd.f32 %v443, %v453
    %v455 = vmul.f32 %v55, %v55
    %v456 = vmul.f32 %v71, %v71
    %v457 = vadd.f32 %v455, %v456
    %s458 = sld [smem:[#allocation6 + $0x23]]
    %v459 = vstv %s458
    %v460 = vmul.f32 %v457, %v459
    %v461 = vadd.f32 %v450, %v460
    %s462 = sld [smem:[#allocation6 + $0x47]]
    %v463 = vstv %s462
    %v464 = vmul.f32 %v457, %v463
    %v465 = vadd.f32 %v454, %v464
    %s466 = sld [smem:[#allocation6 + $0x48]]
    %v467 = vstv %s466
    %v468 = vadd.f32 %v461, %v467
    %s469 = sld [smem:[#allocation6 + $0x49]]
    %v470 = vstv %s469
    %v471 = vadd.f32 %v465, %v470
    %v472 = vtanh.pop %v468
    %v473 = vtanh.pop %v471
    %s474 = scalar_lea.vmem [#allocation2], 16
    %v475 = vld [vmem:[%s474] sm:$0x3]
    %s476 = scalar_lea.vmem [#allocation2], 18
    %v477 = vld [vmem:[%s476] sm:$0x3]
    %s478 = scalar_lea.vmem [#allocation2], 20
    %v479 = vld [vmem:[%s478] sm:$0x3]
    %s480 = scalar_lea.vmem [#allocation2], 22
    %v481 = vld [vmem:[%s480] sm:$0x3]
    %s482 = scalar_lea.vmem [#allocation2], 52
    %v483 = vld [vmem:[%s482] sm:$0x3]
    %s484 = scalar_lea.vmem [#allocation2], 54
    %v485 = vld [vmem:[%s484] sm:$0x3]
    %s486 = scalar_lea.vmem [#allocation2], 56
    %v487 = vld [vmem:[%s486] sm:$0x3]
    %s488 = scalar_lea.vmem [#allocation2], 58
    %v489 = vld [vmem:[%s488] sm:$0x3]
    %v490 = vmul.f32 %v475, %v475
    %v491 = vmul.f32 %v483, %v483
    %v492 = vadd.f32 %v490, %v491
    %s493 = sld [smem:[#allocation6 + $0x4a]]
    %v494 = vstv %s493
    %v495 = vmul.f32 %v492, %v494
    %s496 = sld [smem:[#allocation6 + $0x54]]
    %v497 = vstv %s496
    %v498 = vmul.f32 %v492, %v497
    %v499 = vmul.f32 %v475, %v477
    %v500 = vmul.f32 %v483, %v485
    %v501 = vadd.f32 %v499, %v500
    %s502 = sld [smem:[#allocation6 + $0x4b]]
    %v503 = vstv %s502
    %v504 = vmul.f32 %v501, %v503
    %v505 = vadd.f32 %v495, %v504
    %s506 = sld [smem:[#allocation6 + $0x55]]
    %v507 = vstv %s506
    %v508 = vmul.f32 %v501, %v507
    %v509 = vadd.f32 %v498, %v508
    %v510 = vmul.f32 %v475, %v479
    %v511 = vmul.f32 %v483, %v487
    %v512 = vadd.f32 %v510, %v511
    %s513 = sld [smem:[#allocation6 + $0x4c]]
    %v514 = vstv %s513
    %v515 = vmul.f32 %v512, %v514
    %v516 = vadd.f32 %v505, %v515
    %s517 = sld [smem:[#allocation6 + $0x56]]
    %v518 = vstv %s517
    %v519 = vmul.f32 %v512, %v518
    %v520 = vadd.f32 %v509, %v519
    %v521 = vmul.f32 %v475, %v481
    %v522 = vmul.f32 %v483, %v489
    %v523 = vadd.f32 %v521, %v522
    %s524 = sld [smem:[#allocation6 + $0x4d]]
    %v525 = vstv %s524
    %v526 = vmul.f32 %v523, %v525
    %v527 = vadd.f32 %v516, %v526
    %s528 = sld [smem:[#allocation6 + $0x57]]
    %v529 = vstv %s528
    %v530 = vmul.f32 %v523, %v529
    %v531 = vadd.f32 %v520, %v530
    %v532 = vmul.f32 %v477, %v477
    %v533 = vmul.f32 %v485, %v485
    %v534 = vadd.f32 %v532, %v533
    %s535 = sld [smem:[#allocation6 + $0x4e]]
    %v536 = vstv %s535
    %v537 = vmul.f32 %v534, %v536
    %v538 = vadd.f32 %v527, %v537
    %s539 = sld [smem:[#allocation6 + $0x58]]
    %v540 = vstv %s539
    %v541 = vmul.f32 %v534, %v540
    %v542 = vadd.f32 %v531, %v541
    %v543 = vmul.f32 %v477, %v479
    %v544 = vmul.f32 %v485, %v487
    %v545 = vadd.f32 %v543, %v544
    %s546 = sld [smem:[#allocation6 + $0x4f]]
    %v547 = vstv %s546
    %v548 = vmul.f32 %v545, %v547
    %v549 = vadd.f32 %v538, %v548
    %s550 = sld [smem:[#allocation6 + $0x59]]
    %v551 = vstv %s550
    %v552 = vmul.f32 %v545, %v551
    %v553 = vadd.f32 %v542, %v552
    %v554 = vmul.f32 %v477, %v481
    %v555 = vmul.f32 %v485, %v489
    %v556 = vadd.f32 %v554, %v555
    %s557 = sld [smem:[#allocation6 + $0x50]]
    %v558 = vstv %s557
    %v559 = vmul.f32 %v556, %v558
    %v560 = vadd.f32 %v549, %v559
    %s561 = sld [smem:[#allocation6 + $0x5a]]
    %v562 = vstv %s561
    %v563 = vmul.f32 %v556, %v562
    %v564 = vadd.f32 %v553, %v563
    %v565 = vmul.f32 %v479, %v479
    %v566 = vmul.f32 %v487, %v487
    %v567 = vadd.f32 %v565, %v566
    %s568 = sld [smem:[#allocation6 + $0x51]]
    %v569 = vstv %s568
    %v570 = vmul.f32 %v567, %v569
    %v571 = vadd.f32 %v560, %v570
    %s572 = sld [smem:[#allocation6 + $0x5b]]
    %v573 = vstv %s572
    %v574 = vmul.f32 %v567, %v573
    %v575 = vadd.f32 %v564, %v574
    %v576 = vmul.f32 %v479, %v481
    %v577 = vmul.f32 %v487, %v489
    %v578 = vadd.f32 %v576, %v577
    %s579 = sld [smem:[#allocation6 + $0x52]]
    %v580 = vstv %s579
    %v581 = vmul.f32 %v578, %v580
    %v582 = vadd.f32 %v571, %v581
    %s583 = sld [smem:[#allocation6 + $0x5c]]
    %v584 = vstv %s583
    %v585 = vmul.f32 %v578, %v584
    %v586 = vadd.f32 %v575, %v585
    %v587 = vmul.f32 %v481, %v481
    %v588 = vmul.f32 %v489, %v489
    %v589 = vadd.f32 %v587, %v588
    %s590 = sld [smem:[#allocation6 + $0x53]]
    %v591 = vstv %s590
    %v592 = vmul.f32 %v589, %v591
    %v593 = vadd.f32 %v582, %v592
    %s594 = sld [smem:[#allocation6 + $0x5d]]
    %v595 = vstv %s594
    %v596 = vmul.f32 %v589, %v595
    %v597 = vadd.f32 %v586, %v596
    %s598 = sld [smem:[#allocation6 + $0x5e]]
    %v599 = vstv %s598
    %v600 = vadd.f32 %v593, %v599
    %s601 = sld [smem:[#allocation6 + $0x5f]]
    %v602 = vstv %s601
    %v603 = vadd.f32 %v597, %v602
    %v604 = vtanh.pop %v600
    %v605 = vtanh.pop %v603
    %s606 = scalar_lea.vmem [#allocation2], 24
    %v607 = vld [vmem:[%s606] sm:$0x3]
    %s608 = scalar_lea.vmem [#allocation2], 26
    %v609 = vld [vmem:[%s608] sm:$0x3]
    %s610 = scalar_lea.vmem [#allocation2], 60
    %v611 = vld [vmem:[%s610] sm:$0x3]
    %s612 = scalar_lea.vmem [#allocation2], 62
    %v613 = vld [vmem:[%s612] sm:$0x3]
    %v614 = vmul.f32 %v607, %v607
    %v615 = vmul.f32 %v611, %v611
    %v616 = vadd.f32 %v614, %v615
    %s617 = sld [smem:[#allocation6 + $0x60]]
    %v618 = vstv %s617
    %v619 = vmul.f32 %v616, %v618
    %s620 = sld [smem:[#allocation6 + $0x63]]
    %v621 = vstv %s620
    %v622 = vmul.f32 %v616, %v621
    %s623 = sld [smem:[#allocation6 + $0x66]]
    %v624 = vstv %s623
    %v625 = vmul.f32 %v616, %v624
    %v626 = vmul.f32 %v607, %v609
    %v627 = vmul.f32 %v611, %v613
    %v628 = vadd.f32 %v626, %v627
    %s629 = sld [smem:[#allocation6 + $0x61]]
    %v630 = vstv %s629
    %v631 = vmul.f32 %v628, %v630
    %v632 = vadd.f32 %v619, %v631
    %s633 = sld [smem:[#allocation6 + $0x64]]
    %v634 = vstv %s633
    %v635 = vmul.f32 %v628, %v634
    %v636 = vadd.f32 %v622, %v635
    %s637 = sld [smem:[#allocation6 + $0x67]]
    %v638 = vstv %s637
    %v639 = vmul.f32 %v628, %v638
    %v640 = vadd.f32 %v625, %v639
    %v641 = vmul.f32 %v609, %v609
    %v642 = vmul.f32 %v613, %v613
    %v643 = vadd.f32 %v641, %v642
    %s644 = sld [smem:[#allocation6 + $0x62]]
    %v645 = vstv %s644
    %v646 = vmul.f32 %v643, %v645
    %v647 = vadd.f32 %v632, %v646
    %s648 = sld [smem:[#allocation6 + $0x65]]
    %v649 = vstv %s648
    %v650 = vmul.f32 %v643, %v649
    %v651 = vadd.f32 %v636, %v650
    %s652 = sld [smem:[#allocation6 + $0x68]]
    %v653 = vstv %s652
    %v654 = vmul.f32 %v643, %v653
    %v655 = vadd.f32 %v640, %v654
    %s656 = sld [smem:[#allocation6 + $0x69]]
    %v657 = vstv %s656
    %v658 = vadd.f32 %v647, %v657
    %s659 = sld [smem:[#allocation6 + $0x6a]]
    %v660 = vstv %s659
    %v661 = vadd.f32 %v651, %v660
    %s662 = sld [smem:[#allocation6 + $0x6b]]
    %v663 = vstv %s662
    %v664 = vadd.f32 %v655, %v663
    %v665 = vtanh.pop %v658
    %v666 = vtanh.pop %v661
    %v667 = vtanh.pop %v664
    %s668 = sld [smem:[#allocation6 + $0x6c]]
    %v669 = vstv %s668
    %v670 = vmul.f32 %v665, %v669
    %s671 = sld [smem:[#allocation6 + $0x6d]]
    %v672 = vstv %s671
    %v673 = vmul.f32 %v666, %v672
    %v674 = vadd.f32 %v670, %v673
    %s675 = sld [smem:[#allocation6 + $0x6e]]
    %v676 = vstv %s675
    %v677 = vmul.f32 %v667, %v676
    %v678 = vadd.f32 %v674, %v677
    %s679 = sld [smem:[#allocation6 + $0x72]]
    %v680 = vstv %s679
    %v681 = vadd.f32 %v678, %v680
    %s682 = sld [smem:[#allocation6 + $0x6f]]
    %v683 = vstv %s682
    %v684 = vmul.f32 %v665, %v683
    %s685 = sld [smem:[#allocation6 + $0x70]]
    %v686 = vstv %s685
    %v687 = vmul.f32 %v666, %v686
    %v688 = vadd.f32 %v684, %v687
    %s689 = sld [smem:[#allocation6 + $0x71]]
    %v690 = vstv %s689
    %v691 = vmul.f32 %v667, %v690
    %v692 = vadd.f32 %v688, %v691
    %s693 = sld [smem:[#allocation6 + $0x73]]
    %v694 = vstv %s693
    %v695 = vadd.f32 %v692, %v694
    %v696 = vtanh.pop %v681
    %v697 = vtanh.pop %v695
    %s698 = scalar_lea.vmem [#allocation2], 28
    %v699 = vld [vmem:[%s698] sm:$0x3]
    %s700 = scalar_lea.vmem [#allocation2], 30
    %v701 = vld [vmem:[%s700] sm:$0x3]
    %s702 = scalar_lea.vmem [#allocation2], 32
    %v703 = vld [vmem:[%s702] sm:$0x3]
    %s704 = scalar_lea.vmem [#allocation2], 34
    %v705 = vld [vmem:[%s704] sm:$0x3]
    %s706 = scalar_lea.vmem [#allocation2], 64
    %v707 = vld [vmem:[%s706] sm:$0x3]
    %s708 = scalar_lea.vmem [#allocation2], 66
    %v709 = vld [vmem:[%s708] sm:$0x3]
    %s710 = scalar_lea.vmem [#allocation2], 68
    %v711 = vld [vmem:[%s710] sm:$0x3]
    %s712 = scalar_lea.vmem [#allocation2], 70
    %v713 = vld [vmem:[%s712] sm:$0x3]
    %v714 = vmul.f32 %v699, %v699
    %v715 = vmul.f32 %v707, %v707
    %v716 = vadd.f32 %v714, %v715
    %s717 = sld [smem:[#allocation6 + $0x74]]
    %v718 = vstv %s717
    %v719 = vmul.f32 %v716, %v718
    %s720 = sld [smem:[#allocation6 + $0x7e]]
    %v721 = vstv %s720
    %v722 = vmul.f32 %v716, %v721
    %s723 = sld [smem:[#allocation6 + $0x88]]
    %v724 = vstv %s723
    %v725 = vmul.f32 %v716, %v724
    %v726 = vmul.f32 %v699, %v701
    %v727 = vmul.f32 %v707, %v709
    %v728 = vadd.f32 %v726, %v727
    %s729 = sld [smem:[#allocation6 + $0x75]]
    %v730 = vstv %s729
    %v731 = vmul.f32 %v728, %v730
    %v732 = vadd.f32 %v719, %v731
    %s733 = sld [smem:[#allocation6 + $0x7f]]
    %v734 = vstv %s733
    %v735 = vmul.f32 %v728, %v734
    %v736 = vadd.f32 %v722, %v735
    %s737 = sld [smem:[#allocation6 + $0x89]]
    %v738 = vstv %s737
    %v739 = vmul.f32 %v728, %v738
    %v740 = vadd.f32 %v725, %v739
    %v741 = vmul.f32 %v699, %v703
    %v742 = vmul.f32 %v707, %v711
    %v743 = vadd.f32 %v741, %v742
    %s744 = sld [smem:[#allocation6 + $0x76]]
    %v745 = vstv %s744
    %v746 = vmul.f32 %v743, %v745
    %v747 = vadd.f32 %v732, %v746
    %s748 = sld [smem:[#allocation6 + $0x80]]
    %v749 = vstv %s748
    %v750 = vmul.f32 %v743, %v749
    %v751 = vadd.f32 %v736, %v750
    %s752 = sld [smem:[#allocation6 + $0x8a]]
    %v753 = vstv %s752
    %v754 = vmul.f32 %v743, %v753
    %v755 = vadd.f32 %v740, %v754
    %v756 = vmul.f32 %v699, %v705
    %v757 = vmul.f32 %v707, %v713
    %v758 = vadd.f32 %v756, %v757
    %s759 = sld [smem:[#allocation6 + $0x77]]
    %v760 = vstv %s759
    %v761 = vmul.f32 %v758, %v760
    %v762 = vadd.f32 %v747, %v761
    %s763 = sld [smem:[#allocation6 + $0x81]]
    %v764 = vstv %s763
    %v765 = vmul.f32 %v758, %v764
    %v766 = vadd.f32 %v751, %v765
    %s767 = sld [smem:[#allocation6 + $0x8b]]
    %v768 = vstv %s767
    %v769 = vmul.f32 %v758, %v768
    %v770 = vadd.f32 %v755, %v769
    %v771 = vmul.f32 %v701, %v701
    %v772 = vmul.f32 %v709, %v709
    %v773 = vadd.f32 %v771, %v772
    %s774 = sld [smem:[#allocation6 + $0x78]]
    %v775 = vstv %s774
    %v776 = vmul.f32 %v773, %v775
    %v777 = vadd.f32 %v762, %v776
    %s778 = sld [smem:[#allocation6 + $0x82]]
    %v779 = vstv %s778
    %v780 = vmul.f32 %v773, %v779
    %v781 = vadd.f32 %v766, %v780
    %s782 = sld [smem:[#allocation6 + $0x8c]]
    %v783 = vstv %s782
    %v784 = vmul.f32 %v773, %v783
    %v785 = vadd.f32 %v770, %v784
    %v786 = vmul.f32 %v701, %v703
    %v787 = vmul.f32 %v709, %v711
    %v788 = vadd.f32 %v786, %v787
    %s789 = sld [smem:[#allocation6 + $0x79]]
    %v790 = vstv %s789
    %v791 = vmul.f32 %v788, %v790
    %v792 = vadd.f32 %v777, %v791
    %s793 = sld [smem:[#allocation6 + $0x83]]
    %v794 = vstv %s793
    %v795 = vmul.f32 %v788, %v794
    %v796 = vadd.f32 %v781, %v795
    %s797 = sld [smem:[#allocation6 + $0x8d]]
    %v798 = vstv %s797
    %v799 = vmul.f32 %v788, %v798
    %v800 = vadd.f32 %v785, %v799
    %v801 = vmul.f32 %v701, %v705
    %v802 = vmul.f32 %v709, %v713
    %v803 = vadd.f32 %v801, %v802
    %s804 = sld [smem:[#allocation6 + $0x7a]]
    %v805 = vstv %s804
    %v806 = vmul.f32 %v803, %v805
    %v807 = vadd.f32 %v792, %v806
    %s808 = sld [smem:[#allocation6 + $0x84]]
    %v809 = vstv %s808
    %v810 = vmul.f32 %v803, %v809
    %v811 = vadd.f32 %v796, %v810
    %s812 = sld [smem:[#allocation6 + $0x8e]]
    %v813 = vstv %s812
    %v814 = vmul.f32 %v803, %v813
    %v815 = vadd.f32 %v800, %v814
    %v816 = vmul.f32 %v703, %v703
    %v817 = vmul.f32 %v711, %v711
    %v818 = vadd.f32 %v816, %v817
    %s819 = sld [smem:[#allocation6 + $0x7b]]
    %v820 = vstv %s819
    %v821 = vmul.f32 %v818, %v820
    %v822 = vadd.f32 %v807, %v821
    %s823 = sld [smem:[#allocation6 + $0x85]]
    %v824 = vstv %s823
    %v825 = vmul.f32 %v818, %v824
    %v826 = vadd.f32 %v811, %v825
    %s827 = sld [smem:[#allocation6 + $0x8f]]
    %v828 = vstv %s827
    %v829 = vmul.f32 %v818, %v828
    %v830 = vadd.f32 %v815, %v829
    %v831 = vmul.f32 %v703, %v705
    %v832 = vmul.f32 %v711, %v713
    %v833 = vadd.f32 %v831, %v832
    %s834 = sld [smem:[#allocation6 + $0x7c]]
    %v835 = vstv %s834
    %v836 = vmul.f32 %v833, %v835
    %v837 = vadd.f32 %v822, %v836
    %s838 = sld [smem:[#allocation6 + $0x86]]
    %v839 = vstv %s838
    %v840 = vmul.f32 %v833, %v839
    %v841 = vadd.f32 %v826, %v840
    %s842 = sld [smem:[#allocation6 + $0x90]]
    %v843 = vstv %s842
    %v844 = vmul.f32 %v833, %v843
    %v845 = vadd.f32 %v830, %v844
    %v846 = vmul.f32 %v705, %v705
    %v847 = vmul.f32 %v713, %v713
    %v848 = vadd.f32 %v846, %v847
    %s849 = sld [smem:[#allocation6 + $0x7d]]
    %v850 = vstv %s849
    %v851 = vmul.f32 %v848, %v850
    %v852 = vadd.f32 %v837, %v851
    %s853 = sld [smem:[#allocation6 + $0x87]]
    %v854 = vstv %s853
    %v855 = vmul.f32 %v848, %v854
    %v856 = vadd.f32 %v841, %v855
    %s857 = sld [smem:[#allocation6 + $0x91]]
    %v858 = vstv %s857
    %v859 = vmul.f32 %v848, %v858
    %v860 = vadd.f32 %v845, %v859
    %s861 = sld [smem:[#allocation6 + $0x92]]
    %v862 = vstv %s861
    %v863 = vadd.f32 %v852, %v862
    %s864 = sld [smem:[#allocation6 + $0x93]]
    %v865 = vstv %s864
    %v866 = vadd.f32 %v856, %v865
    %s867 = sld [smem:[#allocation6 + $0x94]]
    %v868 = vstv %s867
    %v869 = vadd.f32 %v860, %v868
    %v870 = vtanh.pop %v863
    %v871 = vtanh.pop %v866
    %v872 = vtanh.pop %v869
    %s873 = sld [smem:[#allocation6 + $0x95]]
    %v874 = vstv %s873
    %v875 = vmul.f32 %v870, %v874
    %s876 = sld [smem:[#allocation6 + $0x96]]
    %v877 = vstv %s876
    %v878 = vmul.f32 %v871, %v877
    %v879 = vadd.f32 %v875, %v878
    %s880 = sld [smem:[#allocation6 + $0x97]]
    %v881 = vstv %s880
    %v882 = vmul.f32 %v872, %v881
    %v883 = vadd.f32 %v879, %v882
    %s884 = sld [smem:[#allocation6 + $0x9b]]
    %v885 = vstv %s884
    %v886 = vadd.f32 %v883, %v885
    %s887 = sld [smem:[#allocation6 + $0x98]]
    %v888 = vstv %s887
    %v889 = vmul.f32 %v870, %v888
    %s890 = sld [smem:[#allocation6 + $0x99]]
    %v891 = vstv %s890
    %v892 = vmul.f32 %v871, %v891
    %v893 = vadd.f32 %v889, %v892
    %s894 = sld [smem:[#allocation6 + $0x9a]]
    %v895 = vstv %s894
    %v896 = vmul.f32 %v872, %v895
    %v897 = vadd.f32 %v893, %v896
    %s898 = sld [smem:[#allocation6 + $0x9c]]
    %v899 = vstv %s898
    %v900 = vadd.f32 %v897, %v899
    %v901 = vtanh.pop %v886
    %v902 = vtanh.pop %v900
    %s903 = sld [smem:[#allocation6 + $0x9d]]
    %v904 = vstv %s903
    %v905 = vmul.f32 %v472, %v904
    %s906 = sld [smem:[#allocation6 + $0x9e]]
    %v907 = vstv %s906
    %v908 = vmul.f32 %v473, %v907
    %v909 = vadd.f32 %v905, %v908
    %s910 = sld [smem:[#allocation6 + $0x9f]]
    %v911 = vstv %s910
    %v912 = vmul.f32 %v604, %v911
    %v913 = vadd.f32 %v909, %v912
    %s914 = sld [smem:[#allocation6 + $0xa0]]
    %v915 = vstv %s914
    %v916 = vmul.f32 %v605, %v915
    %v917 = vadd.f32 %v913, %v916
    %s918 = sld [smem:[#allocation6 + $0xa1]]
    %v919 = vstv %s918
    %v920 = vmul.f32 %v472, %v919
    %s921 = sld [smem:[#allocation6 + $0xa2]]
    %v922 = vstv %s921
    %v923 = vmul.f32 %v473, %v922
    %v924 = vadd.f32 %v920, %v923
    %s925 = sld [smem:[#allocation6 + $0xa3]]
    %v926 = vstv %s925
    %v927 = vmul.f32 %v604, %v926
    %v928 = vadd.f32 %v924, %v927
    %s929 = sld [smem:[#allocation6 + $0xa4]]
    %v930 = vstv %s929
    %v931 = vmul.f32 %v605, %v930
    %v932 = vadd.f32 %v928, %v931
    %s933 = sld [smem:[#allocation6 + $0xa5]]
    %v934 = vstv %s933
    %v935 = vmul.f32 %v472, %v934
    %s936 = sld [smem:[#allocation6 + $0xa6]]
    %v937 = vstv %s936
    %v938 = vmul.f32 %v473, %v937
    %v939 = vadd.f32 %v935, %v938
    %s940 = sld [smem:[#allocation6 + $0xa7]]
    %v941 = vstv %s940
    %v942 = vmul.f32 %v604, %v941
    %v943 = vadd.f32 %v939, %v942
    %s944 = sld [smem:[#allocation6 + $0xa8]]
    %v945 = vstv %s944
    %v946 = vmul.f32 %v605, %v945
    %v947 = vadd.f32 %v943, %v946
    %s948 = sld [smem:[#allocation6 + $0xa9]]
    %v949 = vstv %s948
    %v950 = vmul.f32 %v472, %v949
    %s951 = sld [smem:[#allocation6 + $0xaa]]
    %v952 = vstv %s951
    %v953 = vmul.f32 %v473, %v952
    %v954 = vadd.f32 %v950, %v953
    %s955 = sld [smem:[#allocation6 + $0xab]]
    %v956 = vstv %s955
    %v957 = vmul.f32 %v604, %v956
    %v958 = vadd.f32 %v954, %v957
    %s959 = sld [smem:[#allocation6 + $0xac]]
    %v960 = vstv %s959
    %v961 = vmul.f32 %v605, %v960
    %v962 = vadd.f32 %v958, %v961
    %v963 = vmul.f32 %v696, %v917
    %v964 = vmul.f32 %v697, %v932
    %v965 = vadd.f32 %v963, %v964
    %v966 = vmul.f32 %v901, %v947
    %v967 = vadd.f32 %v965, %v966
    %v968 = vmul.f32 %v902, %v962
    %v969 = vadd.f32 %v967, %v968
    %970 = vst [vmem:[#allocation7] sm:$0x3] %v969
    // Predicated region
    $region18: #{tpu_custom_call.1} parent=1 // pred_check
      _
    $region19: #{tpu_custom_call.1} parent=1 // pred_check_branch
      %972 = sbr.rel (0) target = $region21
    $region20: #{tpu_custom_call.1} parent=1 // pred_region
      %974 = vsyncadd [#allocation4], 0
      %s976 = sshll.u32 [#allocation7], 4
      %s977 = int_to_ptr.vmem [resolvable:$true] %s976
      %s978 = sshll.u32 %s2, 4
      %s979 = int_to_ptr.hbm [resolvable:$true] %s978
      %981 = dma.vmem_to_hbm [thread:$0]  %s977, 32, %s979, [#allocation4]
    $region21: #{tpu_custom_call.1} parent=1 // pred_fallthru
      _
    // Predicated region
    $region22: #{tpu_custom_call.1} parent=1 // pred_check
      _
    $region23: #{tpu_custom_call.1} parent=1 // pred_check_branch
      %983 = sbr.rel (0) target = $region25
    $region24: #{tpu_custom_call.1} parent=1 // pred_region
      %985 = dma.done [#allocation4], 32
    $region25: #{tpu_custom_call.1} parent=1 // pred_fallthru
      _
    %986 = vsyncpa [#allocation3], 1
    %987 = vsyncpa [#allocation4], 1
    %988 = vsyncpa [#allocation5], 1

</llo_original>
